<compile_context>
chip_gen: v5e
topology: v5e:2x2
jax: 0.10.0
libtpu: 0.0.40
codegen_flags: <defaults>
</compile_context>

<pallas_src>
import functools

import jax
import jax.numpy as jnp
from jax import lax
from jax.experimental import pallas as pl
from jax.experimental.pallas import tpu as pltpu

LN_EPS = 1e-5
NEG_BIG = -1e30
VMEM_LIMIT = 32 * 1024 * 1024   # safe on v5e / v6e / v7x


def _round_up(x, m):
    return (x + m - 1) // m * m


def _erf(x):
    # Abramowitz & Stegun 7.1.26, |err| <= 1.5e-7 : only exp/mul/add -> guaranteed Mosaic lowering.
    a1, a2, a3, a4, a5 = 0.254829592, -0.284496736, 1.421413741, -1.453152027, 1.061405429
    p = 0.3275911
    sgn = jnp.where(x >= 0.0, 1.0, -1.0)
    ax = jnp.abs(x)
    t = 1.0 / (1.0 + p * ax)
    poly = ((((a5 * t + a4) * t + a3) * t + a2) * t + a1) * t
    return sgn * (1.0 - poly * jnp.exp(-ax * ax))


def _gelu(x):
    # exact (erf-based) GELU, matching torch.nn.GELU()
    return 0.5 * x * (1.0 + _erf(x * 0.7071067811865476))


# ---------------------------------------------------------------------------
# Kernel 1: fused LayerNorm(norm1) + qkv Linear (+ query scaling).
# ---------------------------------------------------------------------------
def _ln_qkv_kernel(x_ref, g_ref, b_ref, w_ref, bias_ref, scale_ref, o_ref):
    x = x_ref[...].astype(jnp.float32)
    mu = jnp.mean(x, axis=-1, keepdims=True)
    var = jnp.mean((x - mu) ** 2, axis=-1, keepdims=True)
    y = (x - mu) * lax.rsqrt(var + LN_EPS) * g_ref[...] + b_ref[...]
    qkv = jnp.dot(y, w_ref[...], preferred_element_type=jnp.float32) + bias_ref[...]
    o_ref[...] = (qkv * scale_ref[...]).astype(o_ref.dtype)


def ln_qkv(x, g, b, w, bias, scale_row, *, tile):
    R, Cin = x.shape
    Cout = w.shape[1]
    assert R % tile == 0
    return pl.pallas_call(
        _ln_qkv_kernel,
        out_shape=jax.ShapeDtypeStruct((R, Cout), jnp.float32),
        grid_spec=pltpu.PrefetchScalarGridSpec(
            num_scalar_prefetch=0,
            grid=(R // tile,),
            in_specs=[
                pl.BlockSpec((tile, Cin), lambda i: (i, 0)),
                pl.BlockSpec((1, Cin), lambda i: (0, 0)),
                pl.BlockSpec((1, Cin), lambda i: (0, 0)),
                pl.BlockSpec((Cin, Cout), lambda i: (0, 0)),
                pl.BlockSpec((1, Cout), lambda i: (0, 0)),
                pl.BlockSpec((1, Cout), lambda i: (0, 0)),
            ],
            out_specs=pl.BlockSpec((tile, Cout), lambda i: (i, 0)),
        ),
        compiler_params=pltpu.CompilerParams(
            dimension_semantics=("parallel",), vmem_limit_bytes=VMEM_LIMIT),
    )(x, g, b, w, bias, scale_row)


# ---------------------------------------------------------------------------
# Kernel 2: per-attention-pair logits (q.(k+TqSum) + k.TkSum per head).
# Head reduction done with a (C, H) head-mask matmul (no lane slicing needed).
# ---------------------------------------------------------------------------
def _pair_logits_kernel(qg_ref, kb_ref, kg_ref, tk_ref, hmask_ref, o_ref):
    x = (qg_ref[...].astype(jnp.float32) * kb_ref[...].astype(jnp.float32)
         + kg_ref[...].astype(jnp.float32) * tk_ref[...].astype(jnp.float32))
    o_ref[...] = jnp.dot(x, hmask_ref[...],
                         preferred_element_type=jnp.float32).astype(o_ref.dtype)


def pair_logits(qg, kb, kg, tk, hmask, *, tile):
    M, C = qg.shape
    H = hmask.shape[1]
    assert M % tile == 0
    row = pl.BlockSpec((tile, C), lambda i: (i, 0))
    return pl.pallas_call(
        _pair_logits_kernel,
        out_shape=jax.ShapeDtypeStruct((M, H), jnp.float32),
        grid_spec=pltpu.PrefetchScalarGridSpec(
            num_scalar_prefetch=0,
            grid=(M // tile,),
            in_specs=[row, row, row, row,
                      pl.BlockSpec((C, H), lambda i: (0, 0))],
            out_specs=pl.BlockSpec((tile, H), lambda i: (i, 0)),
        ),
        compiler_params=pltpu.CompilerParams(
            dimension_semantics=("parallel",), vmem_limit_bytes=VMEM_LIMIT),
    )(qg, kb, kg, tk, hmask)


# ---------------------------------------------------------------------------
# Kernel 3: per-query masked softmax over (padded) neighbour slots + weighted
# sum of (v + TvSum).  Padded slots carry logit = NEG_BIG and zero values.
# ---------------------------------------------------------------------------
def _segment_attn_kernel(logit_ref, vb_ref, o_ref, *, num_heads, head_ch):
    l = logit_ref[...].astype(jnp.float32)                  # (tile, J, H)
    mx = jnp.max(l, axis=1, keepdims=True)                  # (tile, 1, H)
    e = jnp.exp(l - mx)
    w = e / jnp.sum(e, axis=1, keepdims=True)               # (tile, J, H)
    vb = vb_ref[...].astype(jnp.float32)                    # (tile, J, C)
    outs = []
    for h in range(num_heads):
        wh = w[:, :, h:h + 1]                               # (tile, J, 1)
        vh = vb[:, :, h * head_ch:(h + 1) * head_ch]        # (tile, J, hc)
        outs.append(jnp.sum(wh * vh, axis=1))               # (tile, hc)
    o_ref[...] = jnp.concatenate(outs, axis=-1).astype(o_ref.dtype)


def segment_attention(dense_logits, dense_vb, *, num_heads, tile):
    R, J, H = dense_logits.shape
    C = dense_vb.shape[2]
    assert R % tile == 0
    head_ch = C // num_heads
    kernel = functools.partial(_segment_attn_kernel, num_heads=num_heads, head_ch=head_ch)
    return pl.pallas_call(
        kernel,
        out_shape=jax.ShapeDtypeStruct((R, C), jnp.float32),
        grid_spec=pltpu.PrefetchScalarGridSpec(
            num_scalar_prefetch=0,
            grid=(R // tile,),
            in_specs=[
                pl.BlockSpec((tile, J, H), lambda i: (i, 0, 0)),
                pl.BlockSpec((tile, J, C), lambda i: (i, 0, 0)),
            ],
            out_specs=pl.BlockSpec((tile, C), lambda i: (i, 0)),
        ),
        compiler_params=pltpu.CompilerParams(
            dimension_semantics=("parallel",), vmem_limit_bytes=VMEM_LIMIT),
    )(dense_logits, dense_vb)


# ---------------------------------------------------------------------------
# Kernel 4: proj Linear + residual + LN2 + MLP(fc1, GELU, fc2) + residual.
# ---------------------------------------------------------------------------
def _proj_mlp_kernel(attn_ref, sc_ref, wp_ref, bp_ref, g2_ref, b2_ref,
                     w1_ref, b1_ref, w2_ref, b2m_ref, o_ref):
    a = attn_ref[...].astype(jnp.float32)
    sc = sc_ref[...].astype(jnp.float32)
    h1 = sc + jnp.dot(a, wp_ref[...], preferred_element_type=jnp.float32) + bp_ref[...]
    mu = jnp.mean(h1, axis=-1, keepdims=True)
    var = jnp.mean((h1 - mu) ** 2, axis=-1, keepdims=True)
    y = (h1 - mu) * lax.rsqrt(var + LN_EPS) * g2_ref[...] + b2_ref[...]
    hdn = jnp.dot(y, w1_ref[...], preferred_element_type=jnp.float32) + b1_ref[...]
    hdn = _gelu(hdn)
    z = jnp.dot(hdn, w2_ref[...], preferred_element_type=jnp.float32) + b2m_ref[...]
    o_ref[...] = (h1 + z).astype(o_ref.dtype)


def proj_mlp(attn_out, shortcut, wp, bp, g2, b2, w1, b1, w2, b2m, *, tile):
    R, C = attn_out.shape
    Hd = w1.shape[1]
    assert R % tile == 0
    return pl.pallas_call(
        _proj_mlp_kernel,
        out_shape=jax.ShapeDtypeStruct((R, C), jnp.float32),
        grid_spec=pltpu.PrefetchScalarGridSpec(
            num_scalar_prefetch=0,
            grid=(R // tile,),
            in_specs=[
                pl.BlockSpec((tile, C), lambda i: (i, 0)),
                pl.BlockSpec((tile, C), lambda i: (i, 0)),
                pl.BlockSpec((C, C), lambda i: (0, 0)),
                pl.BlockSpec((1, C), lambda i: (0, 0)),
                pl.BlockSpec((1, C), lambda i: (0, 0)),
                pl.BlockSpec((1, C), lambda i: (0, 0)),
                pl.BlockSpec((C, Hd), lambda i: (0, 0)),
                pl.BlockSpec((1, Hd), lambda i: (0, 0)),
                pl.BlockSpec((Hd, C), lambda i: (0, 0)),
                pl.BlockSpec((1, C), lambda i: (0, 0)),
            ],
            out_specs=pl.BlockSpec((tile, C), lambda i: (i, 0)),
        ),
        compiler_params=pltpu.CompilerParams(
            dimension_semantics=("parallel",), vmem_limit_bytes=VMEM_LIMIT),
    )(attn_out, shortcut, wp, bp, g2, b2, w1, b1, w2, b2m)


# ---------------------------------------------------------------------------
# Full Block forward (Pallas kernels + index-plumbing glue).
# ---------------------------------------------------------------------------
def block_forward(params, feats, coords, index_0, index_1, index_0_offsets, n_max,
                  *, num_heads, window_size, quant_size, row_tile=256, pair_tile=256):
    n, C = feats.shape
    m = index_0.shape[0]
    head_ch = C // num_heads
    scale = head_ch ** -0.5
    J = int(n_max)

    # --- kernel 1: LN1 + QKV (+ query scaling) -------------------------------
    n_pad = _round_up(max(n, row_tile), row_tile)
    feats_p = jnp.pad(feats.astype(jnp.float32), ((0, n_pad - n), (0, 0)))
    scale_row = jnp.concatenate(
        [jnp.full((1, C), scale, jnp.float32), jnp.ones((1, 2 * C), jnp.float32)], axis=-1)
    qkv = ln_qkv(feats_p, params["ln1_g"], params["ln1_b"],
                 params["w_qkv"], params["b_qkv"], scale_row, tile=row_tile)
    q, k, v = qkv[:n, :C], qkv[:n, C:2 * C], qkv[:n, 2 * C:]

    # --- glue: data-dependent gathers (plain JAX) -----------------------------
    qg, kg, vg = q[index_0], k[index_1], v[index_1]
    rel = coords[index_0] - coords[index_1]
    rel = jnp.round(rel * 1e5) / 1e5
    ridx = jnp.floor((rel + 2.0 * window_size - 1e-4) / quant_size).astype(jnp.int32)

    def table_sum(tbl):  # tbl: (2L, H, hc, 3) -> (m, C)
        acc = tbl[:, :, :, 0][ridx[:, 0]]
        acc = acc + tbl[:, :, :, 1][ridx[:, 1]]
        acc = acc + tbl[:, :, :, 2][ridx[:, 2]]
        return acc.reshape(m, C)

    kb = kg + table_sum(params["rel_q_table"])    # k + sum_i Tq[idx_i]
    tk = table_sum(params["rel_k_table"])
    vb = vg + table_sum(params["rel_v_table"])

    # --- kernel 2: per-pair logits --------------------------------------------
    m_pad = _round_up(max(m, pair_tile), pair_tile)

    def pad_pairs(a):
        return jnp.pad(a, ((0, m_pad - m), (0, 0)))

    hmask = jnp.kron(jnp.eye(num_heads, dtype=jnp.float32),
                     jnp.ones((head_ch, 1), jnp.float32))   # (C, H)
    logits = pair_logits(pad_pairs(qg), pad_pairs(kb), pad_pairs(kg), pad_pairs(tk),
                         hmask, tile=pair_tile)[:m]          # (m, H)

    # --- glue: CSR -> dense padded-neighbour layout ---------------------------
    starts = index_0_offsets[:n].astype(jnp.int32)
    slot = jnp.arange(m, dtype=jnp.int32) - starts[index_0]
    dense_logits = jnp.full((n_pad, J, num_heads), NEG_BIG, jnp.float32)
    dense_logits = dense_logits.at[index_0, slot].set(logits)
    dense_vb = jnp.zeros((n_pad, J, C), jnp.float32).at[index_0, slot].set(vb)

    # --- kernel 3: per-query softmax + weighted value sum ---------------------
    attn_out = segment_attention(dense_logits, dense_vb,
                                 num_heads=num_heads, tile=row_tile)     # (n_pad, C)

    # --- kernel 4: proj + residual + LN2 + MLP + residual ----------------------
    out = proj_mlp(attn_out, feats_p,
                   params["w_proj"], params["b_proj"],
                   params["ln2_g"], params["ln2_b"],
                   params["w_fc1"], params["b_fc1"],
                   params["w_fc2"], params["b_fc2"], tile=row_tile)
    return out[:n]


# ---------------------------------------------------------------------------
# Pure-JAX reference of the same forward semantics (validation only).
# ---------------------------------------------------------------------------
def reference_forward(params, feats, coords, index_0, index_1, index_0_offsets, n_max,
                      *, num_heads, window_size, quant_size):
    n, C = feats.shape
    hc = C // num_heads
    scale = hc ** -0.5

    def ln(x, g, b):
        mu = x.mean(-1, keepdims=True)
        var = ((x - mu) ** 2).mean(-1, keepdims=True)
        return (x - mu) / jnp.sqrt(var + LN_EPS) * g + b

    x = ln(feats, params["ln1_g"], params["ln1_b"])
    qkv = x @ params["w_qkv"] + params["b_qkv"]
    q = (qkv[:, :C] * scale).reshape(n, num_heads, hc)
    k = qkv[:, C:2 * C].reshape(n, num_heads, hc)
    v = qkv[:, 2 * C:].reshape(n, num_heads, hc)
    qg, kg, vg = q[index_0], k[index_1], v[index_1]
    attn = (qg * kg).sum(-1)                                    # (m, H)
    rel = coords[index_0] - coords[index_1]
    rel = jnp.round(rel * 1e5) / 1e5
    ridx = jnp.floor((rel + 2.0 * window_size - 1e-4) / quant_size).astype(jnp.int32)

    def tsum(tbl):
        return (tbl[:, :, :, 0][ridx[:, 0]] + tbl[:, :, :, 1][ridx[:, 1]]
                + tbl[:, :, :, 2][ridx[:, 2]])

    attn = attn + (qg * tsum(params["rel_q_table"])).sum(-1) \
                + (kg * tsum(params["rel_k_table"])).sum(-1)
    amax = jax.ops.segment_max(attn, index_0, num_segments=n)
    e = jnp.exp(attn - amax[index_0])
    denom = jax.ops.segment_sum(e, index_0, num_segments=n)
    sm = e / denom[index_0]
    vb = vg + tsum(params["rel_v_table"])
    agg = jax.ops.segment_sum(sm[..., None] * vb, index_0, num_segments=n)
    attn_out = agg.reshape(n, C) @ params["w_proj"] + params["b_proj"]
    h1 = feats + attn_out
    y = ln(h1, params["ln2_g"], params["ln2_b"])
    z = jax.nn.gelu(y @ params["w_fc1"] + params["b_fc1"], approximate=False)
    z = z @ params["w_fc2"] + params["b_fc2"]
    return h1 + z


if __name__ == "__main__":
    # High-precision matmuls for the plain-JAX reference (kernels compute in f32 anyway).
    jax.config.update("jax_default_matmul_precision", "float32")

    embed_channels = 32
    num_heads = 2
    window_size = 2.0
    quant_size = 0.25
    mlp_ratio = 4
    quant_grid_length = int((2 * window_size + 0.0001) // quant_size)     # 16
    table_len = 2 * quant_grid_length                                      # 32
    head_ch = embed_channels // num_heads

    n = 48      # points
    win = 8     # points per attention window (all-pairs inside each window)

    key = jax.random.PRNGKey(0)
    ks = jax.random.split(key, 16)
    feats = jax.random.normal(ks[0], (n, embed_channels), jnp.float32)
    coords = jax.random.uniform(ks[1], (n, 3), jnp.float32, 0.0, 1.5)

    pts = jnp.arange(n, dtype=jnp.int32)
    index_0 = jnp.repeat(pts, win)
    index_1 = ((pts[:, None] // win) * win
               + jnp.arange(win, dtype=jnp.int32)[None, :]).reshape(-1).astype(jnp.int32)
    counts = jnp.full((n,), win, jnp.int32)
    index_0_offsets = jnp.concatenate(
        [jnp.zeros((1,), jnp.int32), jnp.cumsum(counts)]).astype(jnp.int32)
    n_max = win

    def normal(k_, shape, s=0.1):
        return (s * jax.random.normal(k_, shape)).astype(jnp.float32)

    params = dict(
        ln1_g=(1.0 + normal(ks[2], (1, embed_channels))),
        ln1_b=normal(ks[3], (1, embed_channels)),
        w_qkv=normal(ks[4], (embed_channels, 3 * embed_channels)),
        b_qkv=normal(ks[5], (1, 3 * embed_channels)),
        rel_q_table=normal(ks[6], (table_len, num_heads, head_ch, 3), 0.02),
        rel_k_table=normal(ks[7], (table_len, num_heads, head_ch, 3), 0.02),
        rel_v_table=normal(ks[8], (table_len, num_heads, head_ch, 3), 0.02),
        w_proj=normal(ks[9], (embed_channels, embed_channels)),
        b_proj=normal(ks[10], (1, embed_channels)),
        ln2_g=(1.0 + normal(ks[11], (1, embed_channels))),
        ln2_b=normal(ks[12], (1, embed_channels)),
        w_fc1=normal(ks[13], (embed_channels, mlp_ratio * embed_channels)),
        b_fc1=normal(ks[14], (1, mlp_ratio * embed_channels)),
        w_fc2=normal(ks[15], (mlp_ratio * embed_channels, embed_channels)),
        b_fc2=jnp.zeros((1, embed_channels), jnp.float32),
    )

    out = block_forward(params, feats, coords, index_0, index_1, index_0_offsets, n_max,
                        num_heads=num_heads, window_size=window_size, quant_size=quant_size)
    out = jax.block_until_ready(out)

    ref = reference_forward(params, feats, coords, index_0, index_1, index_0_offsets, n_max,
                            num_heads=num_heads, window_size=window_size, quant_size=quant_size)
    err = float(jnp.max(jnp.abs(out - ref)))
    assert out.shape == (n, embed_channels)
    assert jnp.allclose(out, ref, rtol=2e-3, atol=2e-3), f"max abs err {err}"

    print("KERNEL_OK")
</pallas_src>

<mosaic_0001>
module attributes {stable_mosaic.version = 11 : i64} {
  func.func @_ln_qkv_kernel(%arg0: i32, %arg1: memref<256x32xf32, #tpu.memory_space<vmem>>, %arg2: memref<1x32xf32, #tpu.memory_space<vmem>>, %arg3: memref<1x32xf32, #tpu.memory_space<vmem>>, %arg4: memref<32x96xf32, #tpu.memory_space<vmem>>, %arg5: memref<1x96xf32, #tpu.memory_space<vmem>>, %arg6: memref<1x96xf32, #tpu.memory_space<vmem>>, %arg7: memref<256x96xf32, #tpu.memory_space<vmem>>) attributes {dimension_semantics = [#tpu.dimension_semantics<parallel>], iteration_bounds = array<i64: 1>, scalar_prefetch = 0 : i64, scratch_operands = 0 : i64, tpu.core_type = #tpu.core_type<tc>, window_params = [{transform_indices = @transform_0, window_bounds = array<i64: 256, 32>}, {pipeline_mode = #tpu.pipeline_mode<synchronous>, transform_indices = @transform_1, window_bounds = array<i64: 1, 32>}, {pipeline_mode = #tpu.pipeline_mode<synchronous>, transform_indices = @transform_2, window_bounds = array<i64: 1, 32>}, {pipeline_mode = #tpu.pipeline_mode<synchronous>, transform_indices = @transform_3, window_bounds = array<i64: 32, 96>}, {pipeline_mode = #tpu.pipeline_mode<synchronous>, transform_indices = @transform_4, window_bounds = array<i64: 1, 96>}, {pipeline_mode = #tpu.pipeline_mode<synchronous>, transform_indices = @transform_5, window_bounds = array<i64: 1, 96>}, {transform_indices = @transform_6, window_bounds = array<i64: 256, 96>}]} {
    %c0 = arith.constant 0 : index
    %c0_0 = arith.constant 0 : index
    %0 = vector.load %arg1[%c0, %c0_0] : memref<256x32xf32, #tpu.memory_space<vmem>>, vector<256x32xf32>
    %cst = arith.constant dense<0.000000e+00> : vector<256xf32>
    %1 = vector.multi_reduction <add>, %0, %cst [1] : vector<256x32xf32> to vector<256xf32>
    %2 = vector.shape_cast %1 : vector<256xf32> to vector<256x1xf32>
    %cst_1 = arith.constant 3.200000e+01 : f32
    %3 = vector.broadcast %cst_1 : f32 to vector<256x1xf32>
    %4 = arith.divf %2, %3 : vector<256x1xf32>
    %5 = vector.broadcast %4 : vector<256x1xf32> to vector<256x32xf32>
    %6 = arith.subf %0, %5 : vector<256x32xf32>
    %7 = arith.mulf %6, %6 : vector<256x32xf32>
    %cst_2 = arith.constant dense<0.000000e+00> : vector<256xf32>
    %8 = vector.multi_reduction <add>, %7, %cst_2 [1] : vector<256x32xf32> to vector<256xf32>
    %9 = vector.shape_cast %8 : vector<256xf32> to vector<256x1xf32>
    %cst_3 = arith.constant 3.200000e+01 : f32
    %10 = vector.broadcast %cst_3 : f32 to vector<256x1xf32>
    %11 = arith.divf %9, %10 : vector<256x1xf32>
    %12 = vector.broadcast %4 : vector<256x1xf32> to vector<256x32xf32>
    %13 = arith.subf %0, %12 : vector<256x32xf32>
    %cst_4 = arith.constant 9.99999974E-6 : f32
    %14 = vector.broadcast %cst_4 : f32 to vector<256x1xf32>
    %15 = arith.addf %11, %14 : vector<256x1xf32>
    %16 = math.rsqrt %15 : vector<256x1xf32>
    %17 = vector.broadcast %16 : vector<256x1xf32> to vector<256x32xf32>
    %18 = arith.mulf %13, %17 : vector<256x32xf32>
    %c0_5 = arith.constant 0 : index
    %c0_6 = arith.constant 0 : index
    %19 = vector.load %arg2[%c0_5, %c0_6] : memref<1x32xf32, #tpu.memory_space<vmem>>, vector<1x32xf32>
    %20 = vector.broadcast %19 : vector<1x32xf32> to vector<256x32xf32>
    %21 = arith.mulf %18, %20 : vector<256x32xf32>
    %c0_7 = arith.constant 0 : index
    %c0_8 = arith.constant 0 : index
    %22 = vector.load %arg3[%c0_7, %c0_8] : memref<1x32xf32, #tpu.memory_space<vmem>>, vector<1x32xf32>
    %23 = vector.broadcast %22 : vector<1x32xf32> to vector<256x32xf32>
    %24 = arith.addf %21, %23 : vector<256x32xf32>
    %c0_9 = arith.constant 0 : index
    %c0_10 = arith.constant 0 : index
    %25 = vector.load %arg4[%c0_9, %c0_10] : memref<32x96xf32, #tpu.memory_space<vmem>>, vector<32x96xf32>
    %cst_11 = arith.constant dense<0.000000e+00> : vector<256x96xf32>
    %26 = tpu.matmul %24, %25, %cst_11 {dimension_numbers = #tpu.dot_dimension_numbers<[1], [0], [0], [1], [0, 0, 1, 1], [], []>, precision = #tpu.contract_precision<fp32>} : vector<256x32xf32>, vector<32x96xf32>, vector<256x96xf32> -> vector<256x96xf32>
    %c0_12 = arith.constant 0 : index
    %c0_13 = arith.constant 0 : index
    %27 = vector.load %arg5[%c0_12, %c0_13] : memref<1x96xf32, #tpu.memory_space<vmem>>, vector<1x96xf32>
    %28 = vector.broadcast %27 : vector<1x96xf32> to vector<256x96xf32>
    %29 = arith.addf %26, %28 : vector<256x96xf32>
    %c0_14 = arith.constant 0 : index
    %c0_15 = arith.constant 0 : index
    %30 = vector.load %arg6[%c0_14, %c0_15] : memref<1x96xf32, #tpu.memory_space<vmem>>, vector<1x96xf32>
    %31 = vector.broadcast %30 : vector<1x96xf32> to vector<256x96xf32>
    %32 = arith.mulf %29, %31 : vector<256x96xf32>
    %c0_16 = arith.constant 0 : index
    %c0_17 = arith.constant 0 : index
    %33 = vector.load %arg7[%c0_16, %c0_17] : memref<256x96xf32, #tpu.memory_space<vmem>>, vector<256x96xf32>
    tpu.vector_store %arg7[%c0_16, %c0_17], %32 {strides = array<i32>} : memref<256x96xf32, #tpu.memory_space<vmem>>, vector<256x96xf32>,
    return
  }
  func.func @transform_0(%arg0: i32) -> (i32, i32) {
    %c0_i32 = arith.constant 0 : i32
    %c0_i32_0 = arith.constant 0 : i32
    return %arg0, %c0_i32 : i32, i32
  }
  func.func @transform_1(%arg0: i32) -> (i32, i32) {
    %c0_i32 = arith.constant 0 : i32
    %c0_i32_0 = arith.constant 0 : i32
    %c0_i32_1 = arith.constant 0 : i32
    return %c0_i32, %c0_i32_0 : i32, i32
  }
  func.func @transform_2(%arg0: i32) -> (i32, i32) {
    %c0_i32 = arith.constant 0 : i32
    %c0_i32_0 = arith.constant 0 : i32
    %c0_i32_1 = arith.constant 0 : i32
    return %c0_i32, %c0_i32_0 : i32, i32
  }
  func.func @transform_3(%arg0: i32) -> (i32, i32) {
    %c0_i32 = arith.constant 0 : i32
    %c0_i32_0 = arith.constant 0 : i32
    %c0_i32_1 = arith.constant 0 : i32
    return %c0_i32, %c0_i32_0 : i32, i32
  }
  func.func @transform_4(%arg0: i32) -> (i32, i32) {
    %c0_i32 = arith.constant 0 : i32
    %c0_i32_0 = arith.constant 0 : i32
    %c0_i32_1 = arith.constant 0 : i32
    return %c0_i32, %c0_i32_0 : i32, i32
  }
  func.func @transform_5(%arg0: i32) -> (i32, i32) {
    %c0_i32 = arith.constant 0 : i32
    %c0_i32_0 = arith.constant 0 : i32
    %c0_i32_1 = arith.constant 0 : i32
    return %c0_i32, %c0_i32_0 : i32, i32
  }
  func.func @transform_6(%arg0: i32) -> (i32, i32) {
    %c0_i32 = arith.constant 0 : i32
    %c0_i32_0 = arith.constant 0 : i32
    return %arg0, %c0_i32 : i32, i32
  }
}

</mosaic_0001>

<llo_original>
// kernel: tpu_custom_call.1
$region0: #{tpu_custom_call.1}
  #allocation0 [shape = 'u32[]', space=smem, size = 0x4, offset = 0x4, fixed_abs, tag = 'smem constant byte address 0x4 - core index']
  #allocation1 [shape = 'u32[72,128]{1,0:T(1,128)}', space=vmem, size = 0x9000, scoped, tag = 'internal scratch']
  %s0 = inlined_call_operand.vmem [shape: f32[256,32], index: 0, kind: input, shape index: {}]
  %s1 = inlined_call_operand.vmem [shape: f32[1,32], index: 1, kind: input, shape index: {}]
  %s2 = inlined_call_operand.vmem [shape: f32[1,32], index: 2, kind: input, shape index: {}]
  %s3 = inlined_call_operand.vmem [shape: f32[32,96], index: 3, kind: input, shape index: {}]
  %s4 = inlined_call_operand.vmem [shape: f32[1,96], index: 4, kind: input, shape index: {}]
  %s5 = inlined_call_operand.vmem [shape: f32[1,96], index: 5, kind: input, shape index: {}]
  %s6 = inlined_call_operand.vmem [shape: f32[256,96], index: 6, kind: output, shape index: {}]
  %s7 = sld [smem:[#allocation0]]
  $region34: #{tpu_custom_call.1} parent=0
    _
  %s9 = ssub.s32 1, %s7
  %s10 = scalar_select 0, %s9, %s7
  // Predicated region
  $region2: #{tpu_custom_call.1} parent=0 // pred_check
    _
  $region3: #{tpu_custom_call.1} parent=0 // pred_check_branch
    %12 = sbr.rel (0) target = $region5
  $region4: #{tpu_custom_call.1} parent=0 // pred_region
    _
  $region5: #{tpu_custom_call.1} parent=0 // pred_fallthru
    _
  // Predicated region
  $region6: #{tpu_custom_call.1} parent=0 // pred_check
    _
  $region7: #{tpu_custom_call.1} parent=0 // pred_check_branch
    %14 = sbr.rel (0) target = $region9
  $region8: #{tpu_custom_call.1} parent=0 // pred_region
    _
  $region9: #{tpu_custom_call.1} parent=0 // pred_fallthru
    _
  // Predicated region
  $region10: #{tpu_custom_call.1} parent=0 // pred_check
    _
  $region11: #{tpu_custom_call.1} parent=0 // pred_check_branch
    %16 = sbr.rel (0) target = $region13
  $region12: #{tpu_custom_call.1} parent=0 // pred_region
    _
  $region13: #{tpu_custom_call.1} parent=0 // pred_fallthru
    _
  // Predicated region
  $region14: #{tpu_custom_call.1} parent=0 // pred_check
    _
  $region15: #{tpu_custom_call.1} parent=0 // pred_check_branch
    %18 = sbr.rel (0) target = $region17
  $region16: #{tpu_custom_call.1} parent=0 // pred_region
    _
  $region17: #{tpu_custom_call.1} parent=0 // pred_fallthru
    _
  // Predicated region
  $region18: #{tpu_custom_call.1} parent=0 // pred_check
    _
  $region19: #{tpu_custom_call.1} parent=0 // pred_check_branch
    %20 = sbr.rel (0) target = $region21
  $region20: #{tpu_custom_call.1} parent=0 // pred_region
    _
  $region21: #{tpu_custom_call.1} parent=0 // pred_fallthru
    _
  // Predicated region
  $region22: #{tpu_custom_call.1} parent=0 // pred_check
    _
  $region23: #{tpu_custom_call.1} parent=0 // pred_check_branch
    %22 = sbr.rel (0) target = $region25
  $region24: #{tpu_custom_call.1} parent=0 // pred_region
    _
  $region25: #{tpu_custom_call.1} parent=0 // pred_fallthru
    _
  %v23 = vld [vmem:[%s0] sm:$0xff]
  %v24 = vld [vmem:[%s0 + $0x8] sm:$0xff]
  %v25 = vld [vmem:[%s0 + $0x10] sm:$0xff]
  %v26 = vld [vmem:[%s0 + $0x18] sm:$0xff]
  %v27 = vld [vmem:[%s0 + $0x20] sm:$0xff]
  %v28 = vld [vmem:[%s0 + $0x28] sm:$0xff]
  %v29 = vld [vmem:[%s0 + $0x30] sm:$0xff]
  %v30 = vld [vmem:[%s0 + $0x38] sm:$0xff]
  %v31 = vld [vmem:[%s0 + $0x40] sm:$0xff]
  %v32 = vld [vmem:[%s0 + $0x48] sm:$0xff]
  %v33 = vld [vmem:[%s0 + $0x50] sm:$0xff]
  %v34 = vld [vmem:[%s0 + $0x58] sm:$0xff]
  %v35 = vld [vmem:[%s0 + $0x60] sm:$0xff]
  %v36 = vld [vmem:[%s0 + $0x68] sm:$0xff]
  %v37 = vld [vmem:[%s0 + $0x70] sm:$0xff]
  %v38 = vld [vmem:[%s0 + $0x78] sm:$0xff]
  %v39 = vld [vmem:[%s0 + $0x80] sm:$0xff]
  %v40 = vld [vmem:[%s0 + $0x88] sm:$0xff]
  %v41 = vld [vmem:[%s0 + $0x90] sm:$0xff]
  %v42 = vld [vmem:[%s0 + $0x98] sm:$0xff]
  %v43 = vld [vmem:[%s0 + $0xa0] sm:$0xff]
  %v44 = vld [vmem:[%s0 + $0xa8] sm:$0xff]
  %v45 = vld [vmem:[%s0 + $0xb0] sm:$0xff]
  %v46 = vld [vmem:[%s0 + $0xb8] sm:$0xff]
  %v47 = vld [vmem:[%s0 + $0xc0] sm:$0xff]
  %v48 = vld [vmem:[%s0 + $0xc8] sm:$0xff]
  %v49 = vld [vmem:[%s0 + $0xd0] sm:$0xff]
  %v50 = vld [vmem:[%s0 + $0xd8] sm:$0xff]
  %v51 = vld [vmem:[%s0 + $0xe0] sm:$0xff]
  %v52 = vld [vmem:[%s0 + $0xe8] sm:$0xff]
  %v53 = vld [vmem:[%s0 + $0xf0] sm:$0xff]
  %v54 = vld [vmem:[%s0 + $0xf8] sm:$0xff]
  %vm55 = vcmask 261120
  %v56 = vsel %vm55, %v23, 0.0
  %57 = vadd.xlane.f32.xlu0 %v56
  %v58 = vpop.xlane.xlu0 %57
  %v59 = vsel %vm55, %v24, 0.0
  %60 = vadd.xlane.f32.xlu0 %v59
  %v61 = vpop.xlane.xlu0 %60
  %v62 = vsel %vm55, %v25, 0.0
  %63 = vadd.xlane.f32.xlu0 %v62
  %v64 = vpop.xlane.xlu0 %63
  %v65 = vsel %vm55, %v26, 0.0
  %66 = vadd.xlane.f32.xlu0 %v65
  %v67 = vpop.xlane.xlu0 %66
  %v68 = vsel %vm55, %v27, 0.0
  %69 = vadd.xlane.f32.xlu0 %v68
  %v70 = vpop.xlane.xlu0 %69
  %v71 = vsel %vm55, %v28, 0.0
  %72 = vadd.xlane.f32.xlu0 %v71
  %v73 = vpop.xlane.xlu0 %72
  %v74 = vsel %vm55, %v29, 0.0
  %75 = vadd.xlane.f32.xlu0 %v74
  %v76 = vpop.xlane.xlu0 %75
  %v77 = vsel %vm55, %v30, 0.0
  %78 = vadd.xlane.f32.xlu0 %v77
  %v79 = vpop.xlane.xlu0 %78
  %v80 = vsel %vm55, %v31, 0.0
  %81 = vadd.xlane.f32.xlu0 %v80
  %v82 = vpop.xlane.xlu0 %81
  %v83 = vsel %vm55, %v32, 0.0
  %84 = vadd.xlane.f32.xlu0 %v83
  %v85 = vpop.xlane.xlu0 %84
  %v86 = vsel %vm55, %v33, 0.0
  %87 = vadd.xlane.f32.xlu0 %v86
  %v88 = vpop.xlane.xlu0 %87
  %v89 = vsel %vm55, %v34, 0.0
  %90 = vadd.xlane.f32.xlu0 %v89
  %v91 = vpop.xlane.xlu0 %90
  %v92 = vsel %vm55, %v35, 0.0
  %93 = vadd.xlane.f32.xlu0 %v92
  %v94 = vpop.xlane.xlu0 %93
  %v95 = vsel %vm55, %v36, 0.0
  %96 = vadd.xlane.f32.xlu0 %v95
  %v97 = vpop.xlane.xlu0 %96
  %v98 = vsel %vm55, %v37, 0.0
  %99 = vadd.xlane.f32.xlu0 %v98
  %v100 = vpop.xlane.xlu0 %99
  %v101 = vsel %vm55, %v38, 0.0
  %102 = vadd.xlane.f32.xlu0 %v101
  %v103 = vpop.xlane.xlu0 %102
  %v104 = vsel %vm55, %v39, 0.0
  %105 = vadd.xlane.f32.xlu0 %v104
  %v106 = vpop.xlane.xlu0 %105
  %v107 = vsel %vm55, %v40, 0.0
  %108 = vadd.xlane.f32.xlu0 %v107
  %v109 = vpop.xlane.xlu0 %108
  %v110 = vsel %vm55, %v41, 0.0
  %111 = vadd.xlane.f32.xlu0 %v110
  %v112 = vpop.xlane.xlu0 %111
  %v113 = vsel %vm55, %v42, 0.0
  %114 = vadd.xlane.f32.xlu0 %v113
  %v115 = vpop.xlane.xlu0 %114
  %v116 = vsel %vm55, %v43, 0.0
  %117 = vadd.xlane.f32.xlu0 %v116
  %v118 = vpop.xlane.xlu0 %117
  %v119 = vsel %vm55, %v44, 0.0
  %120 = vadd.xlane.f32.xlu0 %v119
  %v121 = vpop.xlane.xlu0 %120
  %v122 = vsel %vm55, %v45, 0.0
  %123 = vadd.xlane.f32.xlu0 %v122
  %v124 = vpop.xlane.xlu0 %123
  %v125 = vsel %vm55, %v46, 0.0
  %126 = vadd.xlane.f32.xlu0 %v125
  %v127 = vpop.xlane.xlu0 %126
  %v128 = vsel %vm55, %v47, 0.0
  %129 = vadd.xlane.f32.xlu0 %v128
  %v130 = vpop.xlane.xlu0 %129
  %v131 = vsel %vm55, %v48, 0.0
  %132 = vadd.xlane.f32.xlu0 %v131
  %v133 = vpop.xlane.xlu0 %132
  %v134 = vsel %vm55, %v49, 0.0
  %135 = vadd.xlane.f32.xlu0 %v134
  %v136 = vpop.xlane.xlu0 %135
  %v137 = vsel %vm55, %v50, 0.0
  %138 = vadd.xlane.f32.xlu0 %v137
  %v139 = vpop.xlane.xlu0 %138
  %v140 = vsel %vm55, %v51, 0.0
  %141 = vadd.xlane.f32.xlu0 %v140
  %v142 = vpop.xlane.xlu0 %141
  %v143 = vsel %vm55, %v52, 0.0
  %144 = vadd.xlane.f32.xlu0 %v143
  %v145 = vpop.xlane.xlu0 %144
  %v146 = vsel %vm55, %v53, 0.0
  %147 = vadd.xlane.f32.xlu0 %v146
  %v148 = vpop.xlane.xlu0 %147
  %v149 = vsel %vm55, %v54, 0.0
  %150 = vadd.xlane.f32.xlu0 %v149
  %v151 = vpop.xlane.xlu0 %150
  %v152 = vrcp.pop 32.0
  %v153 = vmul.f32 32.0, %v152
  %v154 = vsub.f32 1.0, %v153
  %v155 = vmul.f32 %v152, %v154
  %v156 = vadd.f32 %v152, %v155
  %vm157 = vweird.f32 %v152
  %v158 = vsel %vm157, %v152, %v156
  %v159 = vmul.f32 %v58, %v158
  %v160 = vmul.f32 %v61, %v158
  %v161 = vmul.f32 %v64, %v158
  %v162 = vmul.f32 %v67, %v158
  %v163 = vmul.f32 %v70, %v158
  %v164 = vmul.f32 %v73, %v158
  %v165 = vmul.f32 %v76, %v158
  %v166 = vmul.f32 %v79, %v158
  %v167 = vmul.f32 %v82, %v158
  %v168 = vmul.f32 %v85, %v158
  %v169 = vmul.f32 %v88, %v158
  %v170 = vmul.f32 %v91, %v158
  %v171 = vmul.f32 %v94, %v158
  %v172 = vmul.f32 %v97, %v158
  %v173 = vmul.f32 %v100, %v158
  %v174 = vmul.f32 %v103, %v158
  %v175 = vmul.f32 %v106, %v158
  %v176 = vmul.f32 %v109, %v158
  %v177 = vmul.f32 %v112, %v158
  %v178 = vmul.f32 %v115, %v158
  %v179 = vmul.f32 %v118, %v158
  %v180 = vmul.f32 %v121, %v158
  %v181 = vmul.f32 %v124, %v158
  %v182 = vmul.f32 %v127, %v158
  %v183 = vmul.f32 %v130, %v158
  %v184 = vmul.f32 %v133, %v158
  %v185 = vmul.f32 %v136, %v158
  %v186 = vmul.f32 %v139, %v158
  %v187 = vmul.f32 %v142, %v158
  %v188 = vmul.f32 %v145, %v158
  %v189 = vmul.f32 %v148, %v158
  %v190 = vmul.f32 %v151, %v158
  %v191 = vsub.f32 %v23, %v159
  %v192 = vsub.f32 %v24, %v160
  %v193 = vsub.f32 %v25, %v161
  %v194 = vsub.f32 %v26, %v162
  %v195 = vsub.f32 %v27, %v163
  %v196 = vsub.f32 %v28, %v164
  %v197 = vsub.f32 %v29, %v165
  %v198 = vsub.f32 %v30, %v166
  %v199 = vsub.f32 %v31, %v167
  %v200 = vsub.f32 %v32, %v168
  %v201 = vsub.f32 %v33, %v169
  %v202 = vsub.f32 %v34, %v170
  %v203 = vsub.f32 %v35, %v171
  %v204 = vsub.f32 %v36, %v172
  %v205 = vsub.f32 %v37, %v173
  %v206 = vsub.f32 %v38, %v174
  %v207 = vsub.f32 %v39, %v175
  %v208 = vsub.f32 %v40, %v176
  %v209 = vsub.f32 %v41, %v177
  %v210 = vsub.f32 %v42, %v178
  %v211 = vsub.f32 %v43, %v179
  %v212 = vsub.f32 %v44, %v180
  %v213 = vsub.f32 %v45, %v181
  %v214 = vsub.f32 %v46, %v182
  %v215 = vsub.f32 %v47, %v183
  %v216 = vsub.f32 %v48, %v184
  %v217 = vsub.f32 %v49, %v185
  %v218 = vsub.f32 %v50, %v186
  %v219 = vsub.f32 %v51, %v187
  %v220 = vsub.f32 %v52, %v188
  %v221 = vsub.f32 %v53, %v189
  %v222 = vsub.f32 %v54, %v190
  %v223 = vmul.f32 %v191, %v191
  %v224 = vmul.f32 %v192, %v192
  %v225 = vmul.f32 %v193, %v193
  %v226 = vmul.f32 %v194, %v194
  %v227 = vmul.f32 %v195, %v195
  %v228 = vmul.f32 %v196, %v196
  %v229 = vmul.f32 %v197, %v197
  %v230 = vmul.f32 %v198, %v198
  %v231 = vmul.f32 %v199, %v199
  %v232 = vmul.f32 %v200, %v200
  %v233 = vmul.f32 %v201, %v201
  %v234 = vmul.f32 %v202, %v202
  %v235 = vmul.f32 %v203, %v203
  %v236 = vmul.f32 %v204, %v204
  %v237 = vmul.f32 %v205, %v205
  %v238 = vmul.f32 %v206, %v206
  %v239 = vmul.f32 %v207, %v207
  %v240 = vmul.f32 %v208, %v208
  %v241 = vmul.f32 %v209, %v209
  %v242 = vmul.f32 %v210, %v210
  %v243 = vmul.f32 %v211, %v211
  %v244 = vmul.f32 %v212, %v212
  %v245 = vmul.f32 %v213, %v213
  %v246 = vmul.f32 %v214, %v214
  %v247 = vmul.f32 %v215, %v215
  %v248 = vmul.f32 %v216, %v216
  %v249 = vmul.f32 %v217, %v217
  %v250 = vmul.f32 %v218, %v218
  %v251 = vmul.f32 %v219, %v219
  %v252 = vmul.f32 %v220, %v220
  %v253 = vmul.f32 %v221, %v221
  %v254 = vmul.f32 %v222, %v222
  %v255 = vsel %vm55, %v223, 0.0
  %256 = vadd.xlane.f32.xlu0 %v255
  %v257 = vpop.xlane.xlu0 %256
  %v258 = vsel %vm55, %v224, 0.0
  %259 = vadd.xlane.f32.xlu0 %v258
  %v260 = vpop.xlane.xlu0 %259
  %v261 = vsel %vm55, %v225, 0.0
  %262 = vadd.xlane.f32.xlu0 %v261
  %v263 = vpop.xlane.xlu0 %262
  %v264 = vsel %vm55, %v226, 0.0
  %265 = vadd.xlane.f32.xlu0 %v264
  %v266 = vpop.xlane.xlu0 %265
  %v267 = vsel %vm55, %v227, 0.0
  %268 = vadd.xlane.f32.xlu0 %v267
  %v269 = vpop.xlane.xlu0 %268
  %v270 = vsel %vm55, %v228, 0.0
  %271 = vadd.xlane.f32.xlu0 %v270
  %v272 = vpop.xlane.xlu0 %271
  %v273 = vsel %vm55, %v229, 0.0
  %274 = vadd.xlane.f32.xlu0 %v273
  %v275 = vpop.xlane.xlu0 %274
  %v276 = vsel %vm55, %v230, 0.0
  %277 = vadd.xlane.f32.xlu0 %v276
  %v278 = vpop.xlane.xlu0 %277
  %v279 = vsel %vm55, %v231, 0.0
  %280 = vadd.xlane.f32.xlu0 %v279
  %v281 = vpop.xlane.xlu0 %280
  %v282 = vsel %vm55, %v232, 0.0
  %283 = vadd.xlane.f32.xlu0 %v282
  %v284 = vpop.xlane.xlu0 %283
  %v285 = vsel %vm55, %v233, 0.0
  %286 = vadd.xlane.f32.xlu0 %v285
  %v287 = vpop.xlane.xlu0 %286
  %v288 = vsel %vm55, %v234, 0.0
  %289 = vadd.xlane.f32.xlu0 %v288
  %v290 = vpop.xlane.xlu0 %289
  %v291 = vsel %vm55, %v235, 0.0
  %292 = vadd.xlane.f32.xlu0 %v291
  %v293 = vpop.xlane.xlu0 %292
  %v294 = vsel %vm55, %v236, 0.0
  %295 = vadd.xlane.f32.xlu0 %v294
  %v296 = vpop.xlane.xlu0 %295
  %v297 = vsel %vm55, %v237, 0.0
  %298 = vadd.xlane.f32.xlu0 %v297
  %v299 = vpop.xlane.xlu0 %298
  %v300 = vsel %vm55, %v238, 0.0
  %301 = vadd.xlane.f32.xlu0 %v300
  %v302 = vpop.xlane.xlu0 %301
  %v303 = vsel %vm55, %v239, 0.0
  %304 = vadd.xlane.f32.xlu0 %v303
  %v305 = vpop.xlane.xlu0 %304
  %v306 = vsel %vm55, %v240, 0.0
  %307 = vadd.xlane.f32.xlu0 %v306
  %v308 = vpop.xlane.xlu0 %307
  %v309 = vsel %vm55, %v241, 0.0
  %310 = vadd.xlane.f32.xlu0 %v309
  %v311 = vpop.xlane.xlu0 %310
  %v312 = vsel %vm55, %v242, 0.0
  %313 = vadd.xlane.f32.xlu0 %v312
  %v314 = vpop.xlane.xlu0 %313
  %v315 = vsel %vm55, %v243, 0.0
  %316 = vadd.xlane.f32.xlu0 %v315
  %v317 = vpop.xlane.xlu0 %316
  %v318 = vsel %vm55, %v244, 0.0
  %319 = vadd.xlane.f32.xlu0 %v318
  %v320 = vpop.xlane.xlu0 %319
  %v321 = vsel %vm55, %v245, 0.0
  %322 = vadd.xlane.f32.xlu0 %v321
  %v323 = vpop.xlane.xlu0 %322
  %v324 = vsel %vm55, %v246, 0.0
  %325 = vadd.xlane.f32.xlu0 %v324
  %v326 = vpop.xlane.xlu0 %325
  %v327 = vsel %vm55, %v247, 0.0
  %328 = vadd.xlane.f32.xlu0 %v327
  %v329 = vpop.xlane.xlu0 %328
  %v330 = vsel %vm55, %v248, 0.0
  %331 = vadd.xlane.f32.xlu0 %v330
  %v332 = vpop.xlane.xlu0 %331
  %v333 = vsel %vm55, %v249, 0.0
  %334 = vadd.xlane.f32.xlu0 %v333
  %v335 = vpop.xlane.xlu0 %334
  %v336 = vsel %vm55, %v250, 0.0
  %337 = vadd.xlane.f32.xlu0 %v336
  %v338 = vpop.xlane.xlu0 %337
  %v339 = vsel %vm55, %v251, 0.0
  %340 = vadd.xlane.f32.xlu0 %v339
  %v341 = vpop.xlane.xlu0 %340
  %v342 = vsel %vm55, %v252, 0.0
  %343 = vadd.xlane.f32.xlu0 %v342
  %v344 = vpop.xlane.xlu0 %343
  %v345 = vsel %vm55, %v253, 0.0
  %346 = vadd.xlane.f32.xlu0 %v345
  %v347 = vpop.xlane.xlu0 %346
  %v348 = vsel %vm55, %v254, 0.0
  %349 = vadd.xlane.f32.xlu0 %v348
  %v350 = vpop.xlane.xlu0 %349
  %v351 = vmul.f32 %v257, %v158
  %v352 = vmul.f32 %v260, %v158
  %v353 = vmul.f32 %v263, %v158
  %v354 = vmul.f32 %v266, %v158
  %v355 = vmul.f32 %v269, %v158
  %v356 = vmul.f32 %v272, %v158
  %v357 = vmul.f32 %v275, %v158
  %v358 = vmul.f32 %v278, %v158
  %v359 = vmul.f32 %v281, %v158
  %v360 = vmul.f32 %v284, %v158
  %v361 = vmul.f32 %v287, %v158
  %v362 = vmul.f32 %v290, %v158
  %v363 = vmul.f32 %v293, %v158
  %v364 = vmul.f32 %v296, %v158
  %v365 = vmul.f32 %v299, %v158
  %v366 = vmul.f32 %v302, %v158
  %v367 = vmul.f32 %v305, %v158
  %v368 = vmul.f32 %v308, %v158
  %v369 = vmul.f32 %v311, %v158
  %v370 = vmul.f32 %v314, %v158
  %v371 = vmul.f32 %v317, %v158
  %v372 = vmul.f32 %v320, %v158
  %v373 = vmul.f32 %v323, %v158
  %v374 = vmul.f32 %v326, %v158
  %v375 = vmul.f32 %v329, %v158
  %v376 = vmul.f32 %v332, %v158
  %v377 = vmul.f32 %v335, %v158
  %v378 = vmul.f32 %v338, %v158
  %v379 = vmul.f32 %v341, %v158
  %v380 = vmul.f32 %v344, %v158
  %v381 = vmul.f32 %v347, %v158
  %v382 = vmul.f32 %v350, %v158
  %v383 = vadd.f32 %v351, 1e-05
  %v384 = vadd.f32 %v352, 1e-05
  %v385 = vadd.f32 %v353, 1e-05
  %v386 = vadd.f32 %v354, 1e-05
  %v387 = vadd.f32 %v355, 1e-05
  %v388 = vadd.f32 %v356, 1e-05
  %v389 = vadd.f32 %v357, 1e-05
  %v390 = vadd.f32 %v358, 1e-05
  %v391 = vadd.f32 %v359, 1e-05
  %v392 = vadd.f32 %v360, 1e-05
  %v393 = vadd.f32 %v361, 1e-05
  %v394 = vadd.f32 %v362, 1e-05
  %v395 = vadd.f32 %v363, 1e-05
  %v396 = vadd.f32 %v364, 1e-05
  %v397 = vadd.f32 %v365, 1e-05
  %v398 = vadd.f32 %v366, 1e-05
  %v399 = vadd.f32 %v367, 1e-05
  %v400 = vadd.f32 %v368, 1e-05
  %v401 = vadd.f32 %v369, 1e-05
  %v402 = vadd.f32 %v370, 1e-05
  %v403 = vadd.f32 %v371, 1e-05
  %v404 = vadd.f32 %v372, 1e-05
  %v405 = vadd.f32 %v373, 1e-05
  %v406 = vadd.f32 %v374, 1e-05
  %v407 = vadd.f32 %v375, 1e-05
  %v408 = vadd.f32 %v376, 1e-05
  %v409 = vadd.f32 %v377, 1e-05
  %v410 = vadd.f32 %v378, 1e-05
  %v411 = vadd.f32 %v379, 1e-05
  %v412 = vadd.f32 %v380, 1e-05
  %v413 = vadd.f32 %v381, 1e-05
  %v414 = vadd.f32 %v382, 1e-05
  %v415 = vrsqrt.pop %v383
  %v416 = vmul.f32 %v415, %v383
  %v417 = vmul.f32 %v416, %v415
  %v418 = vmul.f32 0.5, %v417
  %v419 = vsub.f32 1.5, %v418
  %v420 = vmul.f32 %v415, %v419
  %vm421 = vweird.f32 %v383
  %vm422 = vweird.f32 %v415
  %vm423 = vmor %vm421, %vm422
  %v424 = vsel %vm423, %v415, %v420
  %v425 = vrsqrt.pop %v384
  %v426 = vmul.f32 %v425, %v384
  %v427 = vmul.f32 %v426, %v425
  %v428 = vmul.f32 0.5, %v427
  %v429 = vsub.f32 1.5, %v428
  %v430 = vmul.f32 %v425, %v429
  %vm431 = vweird.f32 %v384
  %vm432 = vweird.f32 %v425
  %vm433 = vmor %vm431, %vm432
  %v434 = vsel %vm433, %v425, %v430
  %v435 = vrsqrt.pop %v385
  %v436 = vmul.f32 %v435, %v385
  %v437 = vmul.f32 %v436, %v435
  %v438 = vmul.f32 0.5, %v437
  %v439 = vsub.f32 1.5, %v438
  %v440 = vmul.f32 %v435, %v439
  %vm441 = vweird.f32 %v385
  %vm442 = vweird.f32 %v435
  %vm443 = vmor %vm441, %vm442
  %v444 = vsel %vm443, %v435, %v440
  %v445 = vrsqrt.pop %v386
  %v446 = vmul.f32 %v445, %v386
  %v447 = vmul.f32 %v446, %v445
  %v448 = vmul.f32 0.5, %v447
  %v449 = vsub.f32 1.5, %v448
  %v450 = vmul.f32 %v445, %v449
  %vm451 = vweird.f32 %v386
  %vm452 = vweird.f32 %v445
  %vm453 = vmor %vm451, %vm452
  %v454 = vsel %vm453, %v445, %v450
  %v455 = vrsqrt.pop %v387
  %v456 = vmul.f32 %v455, %v387
  %v457 = vmul.f32 %v456, %v455
  %v458 = vmul.f32 0.5, %v457
  %v459 = vsub.f32 1.5, %v458
  %v460 = vmul.f32 %v455, %v459
  %vm461 = vweird.f32 %v387
  %vm462 = vweird.f32 %v455
  %vm463 = vmor %vm461, %vm462
  %v464 = vsel %vm463, %v455, %v460
  %v465 = vrsqrt.pop %v388
  %v466 = vmul.f32 %v465, %v388
  %v467 = vmul.f32 %v466, %v465
  %v468 = vmul.f32 0.5, %v467
  %v469 = vsub.f32 1.5, %v468
  %v470 = vmul.f32 %v465, %v469
  %vm471 = vweird.f32 %v388
  %vm472 = vweird.f32 %v465
  %vm473 = vmor %vm471, %vm472
  %v474 = vsel %vm473, %v465, %v470
  %v475 = vrsqrt.pop %v389
  %v476 = vmul.f32 %v475, %v389
  %v477 = vmul.f32 %v476, %v475
  %v478 = vmul.f32 0.5, %v477
  %v479 = vsub.f32 1.5, %v478
  %v480 = vmul.f32 %v475, %v479
  %vm481 = vweird.f32 %v389
  %vm482 = vweird.f32 %v475
  %vm483 = vmor %vm481, %vm482
  %v484 = vsel %vm483, %v475, %v480
  %v485 = vrsqrt.pop %v390
  %v486 = vmul.f32 %v485, %v390
  %v487 = vmul.f32 %v486, %v485
  %v488 = vmul.f32 0.5, %v487
  %v489 = vsub.f32 1.5, %v488
  %v490 = vmul.f32 %v485, %v489
  %vm491 = vweird.f32 %v390
  %vm492 = vweird.f32 %v485
  %vm493 = vmor %vm491, %vm492
  %v494 = vsel %vm493, %v485, %v490
  %v495 = vrsqrt.pop %v391
  %v496 = vmul.f32 %v495, %v391
  %v497 = vmul.f32 %v496, %v495
  %v498 = vmul.f32 0.5, %v497
  %v499 = vsub.f32 1.5, %v498
  %v500 = vmul.f32 %v495, %v499
  %vm501 = vweird.f32 %v391
  %vm502 = vweird.f32 %v495
  %vm503 = vmor %vm501, %vm502
  %v504 = vsel %vm503, %v495, %v500
  %v505 = vrsqrt.pop %v392
  %v506 = vmul.f32 %v505, %v392
  %v507 = vmul.f32 %v506, %v505
  %v508 = vmul.f32 0.5, %v507
  %v509 = vsub.f32 1.5, %v508
  %v510 = vmul.f32 %v505, %v509
  %vm511 = vweird.f32 %v392
  %vm512 = vweird.f32 %v505
  %vm513 = vmor %vm511, %vm512
  %v514 = vsel %vm513, %v505, %v510
  %v515 = vrsqrt.pop %v393
  %v516 = vmul.f32 %v515, %v393
  %v517 = vmul.f32 %v516, %v515
  %v518 = vmul.f32 0.5, %v517
  %v519 = vsub.f32 1.5, %v518
  %v520 = vmul.f32 %v515, %v519
  %vm521 = vweird.f32 %v393
  %vm522 = vweird.f32 %v515
  %vm523 = vmor %vm521, %vm522
  %v524 = vsel %vm523, %v515, %v520
  %v525 = vrsqrt.pop %v394
  %v526 = vmul.f32 %v525, %v394
  %v527 = vmul.f32 %v526, %v525
  %v528 = vmul.f32 0.5, %v527
  %v529 = vsub.f32 1.5, %v528
  %v530 = vmul.f32 %v525, %v529
  %vm531 = vweird.f32 %v394
  %vm532 = vweird.f32 %v525
  %vm533 = vmor %vm531, %vm532
  %v534 = vsel %vm533, %v525, %v530
  %v535 = vrsqrt.pop %v395
  %v536 = vmul.f32 %v535, %v395
  %v537 = vmul.f32 %v536, %v535
  %v538 = vmul.f32 0.5, %v537
  %v539 = vsub.f32 1.5, %v538
  %v540 = vmul.f32 %v535, %v539
  %vm541 = vweird.f32 %v395
  %vm542 = vweird.f32 %v535
  %vm543 = vmor %vm541, %vm542
  %v544 = vsel %vm543, %v535, %v540
  %v545 = vrsqrt.pop %v396
  %v546 = vmul.f32 %v545, %v396
  %v547 = vmul.f32 %v546, %v545
  %v548 = vmul.f32 0.5, %v547
  %v549 = vsub.f32 1.5, %v548
  %v550 = vmul.f32 %v545, %v549
  %vm551 = vweird.f32 %v396
  %vm552 = vweird.f32 %v545
  %vm553 = vmor %vm551, %vm552
  %v554 = vsel %vm553, %v545, %v550
  %v555 = vrsqrt.pop %v397
  %v556 = vmul.f32 %v555, %v397
  %v557 = vmul.f32 %v556, %v555
  %v558 = vmul.f32 0.5, %v557
  %v559 = vsub.f32 1.5, %v558
  %v560 = vmul.f32 %v555, %v559
  %vm561 = vweird.f32 %v397
  %vm562 = vweird.f32 %v555
  %vm563 = vmor %vm561, %vm562
  %v564 = vsel %vm563, %v555, %v560
  %v565 = vrsqrt.pop %v398
  %v566 = vmul.f32 %v565, %v398
  %v567 = vmul.f32 %v566, %v565
  %v568 = vmul.f32 0.5, %v567
  %v569 = vsub.f32 1.5, %v568
  %v570 = vmul.f32 %v565, %v569
  %vm571 = vweird.f32 %v398
  %vm572 = vweird.f32 %v565
  %vm573 = vmor %vm571, %vm572
  %v574 = vsel %vm573, %v565, %v570
  %v575 = vrsqrt.pop %v399
  %v576 = vmul.f32 %v575, %v399
  %v577 = vmul.f32 %v576, %v575
  %v578 = vmul.f32 0.5, %v577
  %v579 = vsub.f32 1.5, %v578
  %v580 = vmul.f32 %v575, %v579
  %vm581 = vweird.f32 %v399
  %vm582 = vweird.f32 %v575
  %vm583 = vmor %vm581, %vm582
  %v584 = vsel %vm583, %v575, %v580
  %v585 = vrsqrt.pop %v400
  %v586 = vmul.f32 %v585, %v400
  %v587 = vmul.f32 %v586, %v585
  %v588 = vmul.f32 0.5, %v587
  %v589 = vsub.f32 1.5, %v588
  %v590 = vmul.f32 %v585, %v589
  %vm591 = vweird.f32 %v400
  %vm592 = vweird.f32 %v585
  %vm593 = vmor %vm591, %vm592
  %v594 = vsel %vm593, %v585, %v590
  %v595 = vrsqrt.pop %v401
  %v596 = vmul.f32 %v595, %v401
  %v597 = vmul.f32 %v596, %v595
  %v598 = vmul.f32 0.5, %v597
  %v599 = vsub.f32 1.5, %v598
  %v600 = vmul.f32 %v595, %v599
  %vm601 = vweird.f32 %v401
  %vm602 = vweird.f32 %v595
  %vm603 = vmor %vm601, %vm602
  %v604 = vsel %vm603, %v595, %v600
  %v605 = vrsqrt.pop %v402
  %v606 = vmul.f32 %v605, %v402
  %v607 = vmul.f32 %v606, %v605
  %v608 = vmul.f32 0.5, %v607
  %v609 = vsub.f32 1.5, %v608
  %v610 = vmul.f32 %v605, %v609
  %vm611 = vweird.f32 %v402
  %vm612 = vweird.f32 %v605
  %vm613 = vmor %vm611, %vm612
  %v614 = vsel %vm613, %v605, %v610
  %v615 = vrsqrt.pop %v403
  %v616 = vmul.f32 %v615, %v403
  %v617 = vmul.f32 %v616, %v615
  %v618 = vmul.f32 0.5, %v617
  %v619 = vsub.f32 1.5, %v618
  %v620 = vmul.f32 %v615, %v619
  %vm621 = vweird.f32 %v403
  %vm622 = vweird.f32 %v615
  %vm623 = vmor %vm621, %vm622
  %v624 = vsel %vm623, %v615, %v620
  %v625 = vrsqrt.pop %v404
  %v626 = vmul.f32 %v625, %v404
  %v627 = vmul.f32 %v626, %v625
  %v628 = vmul.f32 0.5, %v627
  %v629 = vsub.f32 1.5, %v628
  %v630 = vmul.f32 %v625, %v629
  %vm631 = vweird.f32 %v404
  %vm632 = vweird.f32 %v625
  %vm633 = vmor %vm631, %vm632
  %v634 = vsel %vm633, %v625, %v630
  %v635 = vrsqrt.pop %v405
  %v636 = vmul.f32 %v635, %v405
  %v637 = vmul.f32 %v636, %v635
  %v638 = vmul.f32 0.5, %v637
  %v639 = vsub.f32 1.5, %v638
  %v640 = vmul.f32 %v635, %v639
  %vm641 = vweird.f32 %v405
  %vm642 = vweird.f32 %v635
  %vm643 = vmor %vm641, %vm642
  %v644 = vsel %vm643, %v635, %v640
  %v645 = vrsqrt.pop %v406
  %v646 = vmul.f32 %v645, %v406
  %v647 = vmul.f32 %v646, %v645
  %v648 = vmul.f32 0.5, %v647
  %v649 = vsub.f32 1.5, %v648
  %v650 = vmul.f32 %v645, %v649
  %vm651 = vweird.f32 %v406
  %vm652 = vweird.f32 %v645
  %vm653 = vmor %vm651, %vm652
  %v654 = vsel %vm653, %v645, %v650
  %v655 = vrsqrt.pop %v407
  %v656 = vmul.f32 %v655, %v407
  %v657 = vmul.f32 %v656, %v655
  %v658 = vmul.f32 0.5, %v657
  %v659 = vsub.f32 1.5, %v658
  %v660 = vmul.f32 %v655, %v659
  %vm661 = vweird.f32 %v407
  %vm662 = vweird.f32 %v655
  %vm663 = vmor %vm661, %vm662
  %v664 = vsel %vm663, %v655, %v660
  %v665 = vrsqrt.pop %v408
  %v666 = vmul.f32 %v665, %v408
  %v667 = vmul.f32 %v666, %v665
  %v668 = vmul.f32 0.5, %v667
  %v669 = vsub.f32 1.5, %v668
  %v670 = vmul.f32 %v665, %v669
  %vm671 = vweird.f32 %v408
  %vm672 = vweird.f32 %v665
  %vm673 = vmor %vm671, %vm672
  %v674 = vsel %vm673, %v665, %v670
  %v675 = vrsqrt.pop %v409
  %v676 = vmul.f32 %v675, %v409
  %v677 = vmul.f32 %v676, %v675
  %v678 = vmul.f32 0.5, %v677
  %v679 = vsub.f32 1.5, %v678
  %v680 = vmul.f32 %v675, %v679
  %vm681 = vweird.f32 %v409
  %vm682 = vweird.f32 %v675
  %vm683 = vmor %vm681, %vm682
  %v684 = vsel %vm683, %v675, %v680
  %v685 = vrsqrt.pop %v410
  %v686 = vmul.f32 %v685, %v410
  %v687 = vmul.f32 %v686, %v685
  %v688 = vmul.f32 0.5, %v687
  %v689 = vsub.f32 1.5, %v688
  %v690 = vmul.f32 %v685, %v689
  %vm691 = vweird.f32 %v410
  %vm692 = vweird.f32 %v685
  %vm693 = vmor %vm691, %vm692
  %v694 = vsel %vm693, %v685, %v690
  %v695 = vrsqrt.pop %v411
  %v696 = vmul.f32 %v695, %v411
  %v697 = vmul.f32 %v696, %v695
  %v698 = vmul.f32 0.5, %v697
  %v699 = vsub.f32 1.5, %v698
  %v700 = vmul.f32 %v695, %v699
  %vm701 = vweird.f32 %v411
  %vm702 = vweird.f32 %v695
  %vm703 = vmor %vm701, %vm702
  %v704 = vsel %vm703, %v695, %v700
  %v705 = vrsqrt.pop %v412
  %v706 = vmul.f32 %v705, %v412
  %v707 = vmul.f32 %v706, %v705
  %v708 = vmul.f32 0.5, %v707
  %v709 = vsub.f32 1.5, %v708
  %v710 = vmul.f32 %v705, %v709
  %vm711 = vweird.f32 %v412
  %vm712 = vweird.f32 %v705
  %vm713 = vmor %vm711, %vm712
  %v714 = vsel %vm713, %v705, %v710
  %v715 = vrsqrt.pop %v413
  %v716 = vmul.f32 %v715, %v413
  %v717 = vmul.f32 %v716, %v715
  %v718 = vmul.f32 0.5, %v717
  %v719 = vsub.f32 1.5, %v718
  %v720 = vmul.f32 %v715, %v719
  %vm721 = vweird.f32 %v413
  %vm722 = vweird.f32 %v715
  %vm723 = vmor %vm721, %vm722
  %v724 = vsel %vm723, %v715, %v720
  %v725 = vrsqrt.pop %v414
  %v726 = vmul.f32 %v725, %v414
  %v727 = vmul.f32 %v726, %v725
  %v728 = vmul.f32 0.5, %v727
  %v729 = vsub.f32 1.5, %v728
  %v730 = vmul.f32 %v725, %v729
  %vm731 = vweird.f32 %v414
  %vm732 = vweird.f32 %v725
  %vm733 = vmor %vm731, %vm732
  %v734 = vsel %vm733, %v725, %v730
  %v735 = vmul.f32 %v191, %v424
  %v736 = vmul.f32 %v192, %v434
  %v737 = vmul.f32 %v193, %v444
  %v738 = vmul.f32 %v194, %v454
  %v739 = vmul.f32 %v195, %v464
  %v740 = vmul.f32 %v196, %v474
  %v741 = vmul.f32 %v197, %v484
  %v742 = vmul.f32 %v198, %v494
  %v743 = vmul.f32 %v199, %v504
  %v744 = vmul.f32 %v200, %v514
  %v745 = vmul.f32 %v201, %v524
  %v746 = vmul.f32 %v202, %v534
  %v747 = vmul.f32 %v203, %v544
  %v748 = vmul.f32 %v204, %v554
  %v749 = vmul.f32 %v205, %v564
  %v750 = vmul.f32 %v206, %v574
  %v751 = vmul.f32 %v207, %v584
  %v752 = vmul.f32 %v208, %v594
  %v753 = vmul.f32 %v209, %v604
  %v754 = vmul.f32 %v210, %v614
  %v755 = vmul.f32 %v211, %v624
  %v756 = vmul.f32 %v212, %v634
  %v757 = vmul.f32 %v213, %v644
  %v758 = vmul.f32 %v214, %v654
  %v759 = vmul.f32 %v215, %v664
  %v760 = vmul.f32 %v216, %v674
  %v761 = vmul.f32 %v217, %v684
  %v762 = vmul.f32 %v218, %v694
  %v763 = vmul.f32 %v219, %v704
  %v764 = vmul.f32 %v220, %v714
  %v765 = vmul.f32 %v221, %v724
  %v766 = vmul.f32 %v222, %v734
  %v767 = vld [vmem:[%s1] sm:$0x1]
  %v769 = vperm.slane %v767, 0
  %v771 = vmul.f32 %v735, %v769
  %v772 = vmul.f32 %v736, %v769
  %v773 = vmul.f32 %v737, %v769
  %v774 = vmul.f32 %v738, %v769
  %v775 = vmul.f32 %v739, %v769
  %v776 = vmul.f32 %v740, %v769
  %v777 = vmul.f32 %v741, %v769
  %v778 = vmul.f32 %v742, %v769
  %v779 = vmul.f32 %v743, %v769
  %v780 = vmul.f32 %v744, %v769
  %v781 = vmul.f32 %v745, %v769
  %v782 = vmul.f32 %v746, %v769
  %v783 = vmul.f32 %v747, %v769
  %v784 = vmul.f32 %v748, %v769
  %v785 = vmul.f32 %v749, %v769
  %v786 = vmul.f32 %v750, %v769
  %v787 = vmul.f32 %v751, %v769
  %v788 = vmul.f32 %v752, %v769
  %v789 = vmul.f32 %v753, %v769
  %v790 = vmul.f32 %v754, %v769
  %v791 = vmul.f32 %v755, %v769
  %v792 = vmul.f32 %v756, %v769
  %v793 = vmul.f32 %v757, %v769
  %v794 = vmul.f32 %v758, %v769
  %v795 = vmul.f32 %v759, %v769
  %v796 = vmul.f32 %v760, %v769
  %v797 = vmul.f32 %v761, %v769
  %v798 = vmul.f32 %v762, %v769
  %v799 = vmul.f32 %v763, %v769
  %v800 = vmul.f32 %v764, %v769
  %v801 = vmul.f32 %v765, %v769
  %v802 = vmul.f32 %v766, %v769
  %v803 = vld [vmem:[%s2] sm:$0x1]
  %v805 = vperm.slane %v803, 0
  %v807 = vadd.f32 %v771, %v805
  %v808 = vadd.f32 %v772, %v805
  %v809 = vadd.f32 %v773, %v805
  %v810 = vadd.f32 %v774, %v805
  %v811 = vadd.f32 %v775, %v805
  %v812 = vadd.f32 %v776, %v805
  %v813 = vadd.f32 %v777, %v805
  %v814 = vadd.f32 %v778, %v805
  %v815 = vadd.f32 %v779, %v805
  %v816 = vadd.f32 %v780, %v805
  %v817 = vadd.f32 %v781, %v805
  %v818 = vadd.f32 %v782, %v805
  %v819 = vadd.f32 %v783, %v805
  %v820 = vadd.f32 %v784, %v805
  %v821 = vadd.f32 %v785, %v805
  %v822 = vadd.f32 %v786, %v805
  %v823 = vadd.f32 %v787, %v805
  %v824 = vadd.f32 %v788, %v805
  %v825 = vadd.f32 %v789, %v805
  %v826 = vadd.f32 %v790, %v805
  %v827 = vadd.f32 %v791, %v805
  %v828 = vadd.f32 %v792, %v805
  %v829 = vadd.f32 %v793, %v805
  %v830 = vadd.f32 %v794, %v805
  %v831 = vadd.f32 %v795, %v805
  %v832 = vadd.f32 %v796, %v805
  %v833 = vadd.f32 %v797, %v805
  %v834 = vadd.f32 %v798, %v805
  %v835 = vadd.f32 %v799, %v805
  %v836 = vadd.f32 %v800, %v805
  %v837 = vadd.f32 %v801, %v805
  %v838 = vadd.f32 %v802, %v805
  %v839 = vld [vmem:[%s3] sm:$0xff]
  %v840 = vld [vmem:[%s3 + $0x8] sm:$0xff]
  %v841 = vld [vmem:[%s3 + $0x10] sm:$0xff]
  %v842 = vld [vmem:[%s3 + $0x18] sm:$0xff]
  %v843 = vld [vmem:[%s4] sm:$0x1]
  %v845 = vperm.slane %v843, 0
  %v848 = vsel %vm55, %v807, 0
  %v851 = vsel %vm55, %v808, 0
  %v854 = vsel %vm55, %v809, 0
  %v857 = vsel %vm55, %v810, 0
  %v860 = vsel %vm55, %v811, 0
  %v863 = vsel %vm55, %v812, 0
  %v866 = vsel %vm55, %v813, 0
  %v869 = vsel %vm55, %v814, 0
  %v872 = vsel %vm55, %v815, 0
  %v875 = vsel %vm55, %v816, 0
  %v878 = vsel %vm55, %v817, 0
  %v881 = vsel %vm55, %v818, 0
  %v884 = vsel %vm55, %v819, 0
  %v887 = vsel %vm55, %v820, 0
  %v890 = vsel %vm55, %v821, 0
  %v893 = vsel %vm55, %v822, 0
  %v896 = vsel %vm55, %v823, 0
  %v899 = vsel %vm55, %v824, 0
  %v902 = vsel %vm55, %v825, 0
  %v905 = vsel %vm55, %v826, 0
  %v908 = vsel %vm55, %v827, 0
  %v911 = vsel %vm55, %v828, 0
  %v914 = vsel %vm55, %v829, 0
  %v917 = vsel %vm55, %v830, 0
  %v920 = vsel %vm55, %v831, 0
  %v923 = vsel %vm55, %v832, 0
  %v926 = vsel %vm55, %v833, 0
  %v929 = vsel %vm55, %v834, 0
  %v932 = vsel %vm55, %v835, 0
  %v935 = vsel %vm55, %v836, 0
  %v938 = vsel %vm55, %v837, 0
  %v941 = vsel %vm55, %v838, 0
  %943 = vmatpush.msra.mxu0 0.0
  %944 = vmatpush.msra.mxu0 0.0
  %945 = vmatpush.msra.mxu0 0.0
  %946 = vmatpush.msra.mxu0 0.0
  %947 = vmatpush.msra.mxu0 0.0
  %948 = vmatpush.msra.mxu0 0.0
  %949 = vmatpush.msra.mxu0 0.0
  %950 = vmatpush.msra.mxu0 0.0
  %951 = vmatpush.msra.mxu0 0.0
  %952 = vmatpush.msra.mxu0 0.0
  %953 = vmatpush.msra.mxu0 0.0
  %954 = vmatpush.msra.mxu0 0.0
  %v955 = vand.u32 %v842, 4294901760
  %956 = vmatpush.msra.mxu0 %v955
  %v957 = vand.u32 %v841, 4294901760
  %958 = vmatpush.msra.mxu0 %v957
  %v959 = vand.u32 %v840, 4294901760
  %960 = vmatpush.msra.mxu0 %v959
  %v961 = vand.u32 %v839, 4294901760
  %962 = vmatpush.msra.mxu0 %v961
  %v963 = vand.u32 %v848, 4294901760
  %v964 = vsub.f32 %v848, %v963
  %v965 = vand.u32 %v964, 4294901760
  %v966 = vsub.f32 %v964, %v965
  %v967 = vand.u32 %v966, 4294901760
  %968 = vmatmul.f32.gmra.mxu0 %v967
  %v969 = vpop.f32.mrf.mxu0
  %v970 = vadd.f32 %v845, %v969
  %v971 = vand.u32 %v851, 4294901760
  %v972 = vsub.f32 %v851, %v971
  %v973 = vand.u32 %v972, 4294901760
  %v974 = vsub.f32 %v972, %v973
  %v975 = vand.u32 %v974, 4294901760
  %976 = vmatmul.f32.gmra.mxu0 %v975
  %v977 = vpop.f32.mrf.mxu0
  %v978 = vadd.f32 %v845, %v977
  %v979 = vand.u32 %v854, 4294901760
  %v980 = vsub.f32 %v854, %v979
  %v981 = vand.u32 %v980, 4294901760
  %v982 = vsub.f32 %v980, %v981
  %v983 = vand.u32 %v982, 4294901760
  %984 = vmatmul.f32.gmra.mxu0 %v983
  %v985 = vpop.f32.mrf.mxu0
  %v986 = vadd.f32 %v845, %v985
  %v987 = vand.u32 %v857, 4294901760
  %v988 = vsub.f32 %v857, %v987
  %v989 = vand.u32 %v988, 4294901760
  %v990 = vsub.f32 %v988, %v989
  %v991 = vand.u32 %v990, 4294901760
  %992 = vmatmul.f32.gmra.mxu0 %v991
  %v993 = vpop.f32.mrf.mxu0
  %v994 = vadd.f32 %v845, %v993
  %v995 = vand.u32 %v860, 4294901760
  %v996 = vsub.f32 %v860, %v995
  %v997 = vand.u32 %v996, 4294901760
  %v998 = vsub.f32 %v996, %v997
  %v999 = vand.u32 %v998, 4294901760
  %1000 = vmatmul.f32.gmra.mxu0 %v999
  %v1001 = vpop.f32.mrf.mxu0
  %v1002 = vadd.f32 %v845, %v1001
  %v1003 = vand.u32 %v863, 4294901760
  %v1004 = vsub.f32 %v863, %v1003
  %v1005 = vand.u32 %v1004, 4294901760
  %v1006 = vsub.f32 %v1004, %v1005
  %v1007 = vand.u32 %v1006, 4294901760
  %1008 = vmatmul.f32.gmra.mxu0 %v1007
  %v1009 = vpop.f32.mrf.mxu0
  %v1010 = vadd.f32 %v845, %v1009
  %v1011 = vand.u32 %v866, 4294901760
  %v1012 = vsub.f32 %v866, %v1011
  %v1013 = vand.u32 %v1012, 4294901760
  %v1014 = vsub.f32 %v1012, %v1013
  %v1015 = vand.u32 %v1014, 4294901760
  %1016 = vmatmul.f32.gmra.mxu0 %v1015
  %v1017 = vpop.f32.mrf.mxu0
  %v1018 = vadd.f32 %v845, %v1017
  %v1019 = vand.u32 %v869, 4294901760
  %v1020 = vsub.f32 %v869, %v1019
  %v1021 = vand.u32 %v1020, 4294901760
  %v1022 = vsub.f32 %v1020, %v1021
  %v1023 = vand.u32 %v1022, 4294901760
  %1024 = vmatmul.f32.gmra.mxu0 %v1023
  %v1025 = vpop.f32.mrf.mxu0
  %v1026 = vadd.f32 %v845, %v1025
  %v1027 = vand.u32 %v872, 4294901760
  %v1028 = vsub.f32 %v872, %v1027
  %v1029 = vand.u32 %v1028, 4294901760
  %v1030 = vsub.f32 %v1028, %v1029
  %v1031 = vand.u32 %v1030, 4294901760
  %1032 = vmatmul.f32.gmra.mxu0 %v1031
  %v1033 = vpop.f32.mrf.mxu0
  %v1034 = vadd.f32 %v845, %v1033
  %v1035 = vand.u32 %v875, 4294901760
  %v1036 = vsub.f32 %v875, %v1035
  %v1037 = vand.u32 %v1036, 4294901760
  %v1038 = vsub.f32 %v1036, %v1037
  %v1039 = vand.u32 %v1038, 4294901760
  %1040 = vmatmul.f32.gmra.mxu0 %v1039
  %v1041 = vpop.f32.mrf.mxu0
  %v1042 = vadd.f32 %v845, %v1041
  %v1043 = vand.u32 %v878, 4294901760
  %v1044 = vsub.f32 %v878, %v1043
  %v1045 = vand.u32 %v1044, 4294901760
  %v1046 = vsub.f32 %v1044, %v1045
  %v1047 = vand.u32 %v1046, 4294901760
  %1048 = vmatmul.f32.gmra.mxu0 %v1047
  %v1049 = vpop.f32.mrf.mxu0
  %v1050 = vadd.f32 %v845, %v1049
  %v1051 = vand.u32 %v881, 4294901760
  %v1052 = vsub.f32 %v881, %v1051
  %v1053 = vand.u32 %v1052, 4294901760
  %v1054 = vsub.f32 %v1052, %v1053
  %v1055 = vand.u32 %v1054, 4294901760
  %1056 = vmatmul.f32.gmra.mxu0 %v1055
  %v1057 = vpop.f32.mrf.mxu0
  %v1058 = vadd.f32 %v845, %v1057
  %v1059 = vand.u32 %v884, 4294901760
  %v1060 = vsub.f32 %v884, %v1059
  %v1061 = vand.u32 %v1060, 4294901760
  %v1062 = vsub.f32 %v1060, %v1061
  %v1063 = vand.u32 %v1062, 4294901760
  %1064 = vmatmul.f32.gmra.mxu0 %v1063
  %v1065 = vpop.f32.mrf.mxu0
  %v1066 = vadd.f32 %v845, %v1065
  %v1067 = vand.u32 %v887, 4294901760
  %v1068 = vsub.f32 %v887, %v1067
  %v1069 = vand.u32 %v1068, 4294901760
  %v1070 = vsub.f32 %v1068, %v1069
  %v1071 = vand.u32 %v1070, 4294901760
  %1072 = vmatmul.f32.gmra.mxu0 %v1071
  %v1073 = vpop.f32.mrf.mxu0
  %v1074 = vadd.f32 %v845, %v1073
  %v1075 = vand.u32 %v890, 4294901760
  %v1076 = vsub.f32 %v890, %v1075
  %v1077 = vand.u32 %v1076, 4294901760
  %v1078 = vsub.f32 %v1076, %v1077
  %v1079 = vand.u32 %v1078, 4294901760
  %1080 = vmatmul.f32.gmra.mxu0 %v1079
  %v1081 = vpop.f32.mrf.mxu0
  %v1082 = vadd.f32 %v845, %v1081
  %v1083 = vand.u32 %v893, 4294901760
  %v1084 = vsub.f32 %v893, %v1083
  %v1085 = vand.u32 %v1084, 4294901760
  %v1086 = vsub.f32 %v1084, %v1085
  %v1087 = vand.u32 %v1086, 4294901760
  %1088 = vmatmul.f32.gmra.mxu0 %v1087
  %v1089 = vpop.f32.mrf.mxu0
  %v1090 = vadd.f32 %v845, %v1089
  %v1091 = vand.u32 %v896, 4294901760
  %v1092 = vsub.f32 %v896, %v1091
  %v1093 = vand.u32 %v1092, 4294901760
  %v1094 = vsub.f32 %v1092, %v1093
  %v1095 = vand.u32 %v1094, 4294901760
  %1096 = vmatmul.f32.gmra.mxu0 %v1095
  %v1097 = vpop.f32.mrf.mxu0
  %v1098 = vadd.f32 %v845, %v1097
  %v1099 = vand.u32 %v899, 4294901760
  %v1100 = vsub.f32 %v899, %v1099
  %v1101 = vand.u32 %v1100, 4294901760
  %v1102 = vsub.f32 %v1100, %v1101
  %v1103 = vand.u32 %v1102, 4294901760
  %1104 = vmatmul.f32.gmra.mxu0 %v1103
  %v1105 = vpop.f32.mrf.mxu0
  %v1106 = vadd.f32 %v845, %v1105
  %v1107 = vand.u32 %v902, 4294901760
  %v1108 = vsub.f32 %v902, %v1107
  %v1109 = vand.u32 %v1108, 4294901760
  %v1110 = vsub.f32 %v1108, %v1109
  %v1111 = vand.u32 %v1110, 4294901760
  %1112 = vmatmul.f32.gmra.mxu0 %v1111
  %v1113 = vpop.f32.mrf.mxu0
  %v1114 = vadd.f32 %v845, %v1113
  %v1115 = vand.u32 %v905, 4294901760
  %v1116 = vsub.f32 %v905, %v1115
  %v1117 = vand.u32 %v1116, 4294901760
  %v1118 = vsub.f32 %v1116, %v1117
  %v1119 = vand.u32 %v1118, 4294901760
  %1120 = vmatmul.f32.gmra.mxu0 %v1119
  %v1121 = vpop.f32.mrf.mxu0
  %v1122 = vadd.f32 %v845, %v1121
  %v1123 = vand.u32 %v908, 4294901760
  %v1124 = vsub.f32 %v908, %v1123
  %v1125 = vand.u32 %v1124, 4294901760
  %v1126 = vsub.f32 %v1124, %v1125
  %v1127 = vand.u32 %v1126, 4294901760
  %1128 = vmatmul.f32.gmra.mxu0 %v1127
  %v1129 = vpop.f32.mrf.mxu0
  %v1130 = vadd.f32 %v845, %v1129
  %v1131 = vand.u32 %v911, 4294901760
  %v1132 = vsub.f32 %v911, %v1131
  %v1133 = vand.u32 %v1132, 4294901760
  %v1134 = vsub.f32 %v1132, %v1133
  %v1135 = vand.u32 %v1134, 4294901760
  %1136 = vmatmul.f32.gmra.mxu0 %v1135
  %v1137 = vpop.f32.mrf.mxu0
  %v1138 = vadd.f32 %v845, %v1137
  %v1139 = vand.u32 %v914, 4294901760
  %v1140 = vsub.f32 %v914, %v1139
  %v1141 = vand.u32 %v1140, 4294901760
  %v1142 = vsub.f32 %v1140, %v1141
  %v1143 = vand.u32 %v1142, 4294901760
  %1144 = vmatmul.f32.gmra.mxu0 %v1143
  %v1145 = vpop.f32.mrf.mxu0
  %v1146 = vadd.f32 %v845, %v1145
  %v1147 = vand.u32 %v917, 4294901760
  %v1148 = vsub.f32 %v917, %v1147
  %v1149 = vand.u32 %v1148, 4294901760
  %v1150 = vsub.f32 %v1148, %v1149
  %v1151 = vand.u32 %v1150, 4294901760
  %1152 = vmatmul.f32.gmra.mxu0 %v1151
  %v1153 = vpop.f32.mrf.mxu0
  %v1154 = vadd.f32 %v845, %v1153
  %v1155 = vand.u32 %v920, 4294901760
  %v1156 = vsub.f32 %v920, %v1155
  %v1157 = vand.u32 %v1156, 4294901760
  %v1158 = vsub.f32 %v1156, %v1157
  %v1159 = vand.u32 %v1158, 4294901760
  %1160 = vmatmul.f32.gmra.mxu0 %v1159
  %v1161 = vpop.f32.mrf.mxu0
  %v1162 = vadd.f32 %v845, %v1161
  %v1163 = vand.u32 %v923, 4294901760
  %v1164 = vsub.f32 %v923, %v1163
  %v1165 = vand.u32 %v1164, 4294901760
  %v1166 = vsub.f32 %v1164, %v1165
  %v1167 = vand.u32 %v1166, 4294901760
  %1168 = vmatmul.f32.gmra.mxu0 %v1167
  %v1169 = vpop.f32.mrf.mxu0
  %v1170 = vadd.f32 %v845, %v1169
  %v1171 = vand.u32 %v926, 4294901760
  %v1172 = vsub.f32 %v926, %v1171
  %v1173 = vand.u32 %v1172, 4294901760
  %v1174 = vsub.f32 %v1172, %v1173
  %v1175 = vand.u32 %v1174, 4294901760
  %1176 = vmatmul.f32.gmra.mxu0 %v1175
  %v1177 = vpop.f32.mrf.mxu0
  %v1178 = vadd.f32 %v845, %v1177
  %v1179 = vand.u32 %v929, 4294901760
  %v1180 = vsub.f32 %v929, %v1179
  %v1181 = vand.u32 %v1180, 4294901760
  %v1182 = vsub.f32 %v1180, %v1181
  %v1183 = vand.u32 %v1182, 4294901760
  %1184 = vmatmul.f32.gmra.mxu0 %v1183
  %v1185 = vpop.f32.mrf.mxu0
  %v1186 = vadd.f32 %v845, %v1185
  %v1187 = vand.u32 %v932, 4294901760
  %v1188 = vsub.f32 %v932, %v1187
  %v1189 = vand.u32 %v1188, 4294901760
  %v1190 = vsub.f32 %v1188, %v1189
  %v1191 = vand.u32 %v1190, 4294901760
  %1192 = vmatmul.f32.gmra.mxu0 %v1191
  %v1193 = vpop.f32.mrf.mxu0
  %v1194 = vadd.f32 %v845, %v1193
  %v1195 = vand.u32 %v935, 4294901760
  %v1196 = vsub.f32 %v935, %v1195
  %v1197 = vand.u32 %v1196, 4294901760
  %v1198 = vsub.f32 %v1196, %v1197
  %v1199 = vand.u32 %v1198, 4294901760
  %1200 = vmatmul.f32.gmra.mxu0 %v1199
  %v1201 = vpop.f32.mrf.mxu0
  %v1202 = vadd.f32 %v845, %v1201
  %v1203 = vand.u32 %v938, 4294901760
  %v1204 = vsub.f32 %v938, %v1203
  %v1205 = vand.u32 %v1204, 4294901760
  %v1206 = vsub.f32 %v1204, %v1205
  %v1207 = vand.u32 %v1206, 4294901760
  %1208 = vmatmul.f32.gmra.mxu0 %v1207
  %v1209 = vpop.f32.mrf.mxu0
  %v1210 = vadd.f32 %v845, %v1209
  %v1211 = vand.u32 %v941, 4294901760
  %v1212 = vsub.f32 %v941, %v1211
  %v1213 = vand.u32 %v1212, 4294901760
  %v1214 = vsub.f32 %v1212, %v1213
  %v1215 = vand.u32 %v1214, 4294901760
  %1216 = vmatmul.f32.gmra.mxu0 %v1215
  %v1217 = vpop.f32.mrf.mxu0
  %v1218 = vadd.f32 %v845, %v1217
  %1219 = vdwg.mxu0
  %1220 = vmatpush.msra.mxu0 0.0
  %1221 = vmatpush.msra.mxu0 0.0
  %1222 = vmatpush.msra.mxu0 0.0
  %1223 = vmatpush.msra.mxu0 0.0
  %1224 = vmatpush.msra.mxu0 0.0
  %1225 = vmatpush.msra.mxu0 0.0
  %1226 = vmatpush.msra.mxu0 0.0
  %1227 = vmatpush.msra.mxu0 0.0
  %1228 = vmatpush.msra.mxu0 0.0
  %1229 = vmatpush.msra.mxu0 0.0
  %1230 = vmatpush.msra.mxu0 0.0
  %1231 = vmatpush.msra.mxu0 0.0
  %v1232 = vand.u32 %v842, 4294901760
  %v1233 = vsub.f32 %v842, %v1232
  %v1234 = vand.u32 %v1233, 4294901760
  %v1235 = vsub.f32 %v1233, %v1234
  %v1236 = vand.u32 %v1235, 4294901760
  %1237 = vmatpush.msra.mxu0 %v1236
  %v1238 = vand.u32 %v841, 4294901760
  %v1239 = vsub.f32 %v841, %v1238
  %v1240 = vand.u32 %v1239, 4294901760
  %v1241 = vsub.f32 %v1239, %v1240
  %v1242 = vand.u32 %v1241, 4294901760
  %1243 = vmatpush.msra.mxu0 %v1242
  %v1244 = vand.u32 %v840, 4294901760
  %v1245 = vsub.f32 %v840, %v1244
  %v1246 = vand.u32 %v1245, 4294901760
  %v1247 = vsub.f32 %v1245, %v1246
  %v1248 = vand.u32 %v1247, 4294901760
  %1249 = vmatpush.msra.mxu0 %v1248
  %v1250 = vand.u32 %v839, 4294901760
  %v1251 = vsub.f32 %v839, %v1250
  %v1252 = vand.u32 %v1251, 4294901760
  %v1253 = vsub.f32 %v1251, %v1252
  %v1254 = vand.u32 %v1253, 4294901760
  %1255 = vmatpush.msra.mxu0 %v1254
  %v1256 = vand.u32 %v848, 4294901760
  %1257 = vmatmul.f32.gmra.mxu0 %v1256
  %v1258 = vpop.f32.mrf.mxu0
  %v1259 = vadd.f32 %v970, %v1258
  %v1260 = vand.u32 %v851, 4294901760
  %1261 = vmatmul.f32.gmra.mxu0 %v1260
  %v1262 = vpop.f32.mrf.mxu0
  %v1263 = vadd.f32 %v978, %v1262
  %v1264 = vand.u32 %v854, 4294901760
  %1265 = vmatmul.f32.gmra.mxu0 %v1264
  %v1266 = vpop.f32.mrf.mxu0
  %v1267 = vadd.f32 %v986, %v1266
  %v1268 = vand.u32 %v857, 4294901760
  %1269 = vmatmul.f32.gmra.mxu0 %v1268
  %v1270 = vpop.f32.mrf.mxu0
  %v1271 = vadd.f32 %v994, %v1270
  %v1272 = vand.u32 %v860, 4294901760
  %1273 = vmatmul.f32.gmra.mxu0 %v1272
  %v1274 = vpop.f32.mrf.mxu0
  %v1275 = vadd.f32 %v1002, %v1274
  %v1276 = vand.u32 %v863, 4294901760
  %1277 = vmatmul.f32.gmra.mxu0 %v1276
  %v1278 = vpop.f32.mrf.mxu0
  %v1279 = vadd.f32 %v1010, %v1278
  %v1280 = vand.u32 %v866, 4294901760
  %1281 = vmatmul.f32.gmra.mxu0 %v1280
  %v1282 = vpop.f32.mrf.mxu0
  %v1283 = vadd.f32 %v1018, %v1282
  %v1284 = vand.u32 %v869, 4294901760
  %1285 = vmatmul.f32.gmra.mxu0 %v1284
  %v1286 = vpop.f32.mrf.mxu0
  %v1287 = vadd.f32 %v1026, %v1286
  %v1288 = vand.u32 %v872, 4294901760
  %1289 = vmatmul.f32.gmra.mxu0 %v1288
  %v1290 = vpop.f32.mrf.mxu0
  %v1291 = vadd.f32 %v1034, %v1290
  %v1292 = vand.u32 %v875, 4294901760
  %1293 = vmatmul.f32.gmra.mxu0 %v1292
  %v1294 = vpop.f32.mrf.mxu0
  %v1295 = vadd.f32 %v1042, %v1294
  %v1296 = vand.u32 %v878, 4294901760
  %1297 = vmatmul.f32.gmra.mxu0 %v1296
  %v1298 = vpop.f32.mrf.mxu0
  %v1299 = vadd.f32 %v1050, %v1298
  %v1300 = vand.u32 %v881, 4294901760
  %1301 = vmatmul.f32.gmra.mxu0 %v1300
  %v1302 = vpop.f32.mrf.mxu0
  %v1303 = vadd.f32 %v1058, %v1302
  %v1304 = vand.u32 %v884, 4294901760
  %1305 = vmatmul.f32.gmra.mxu0 %v1304
  %v1306 = vpop.f32.mrf.mxu0
  %v1307 = vadd.f32 %v1066, %v1306
  %v1308 = vand.u32 %v887, 4294901760
  %1309 = vmatmul.f32.gmra.mxu0 %v1308
  %v1310 = vpop.f32.mrf.mxu0
  %v1311 = vadd.f32 %v1074, %v1310
  %v1312 = vand.u32 %v890, 4294901760
  %1313 = vmatmul.f32.gmra.mxu0 %v1312
  %v1314 = vpop.f32.mrf.mxu0
  %v1315 = vadd.f32 %v1082, %v1314
  %v1316 = vand.u32 %v893, 4294901760
  %1317 = vmatmul.f32.gmra.mxu0 %v1316
  %v1318 = vpop.f32.mrf.mxu0
  %v1319 = vadd.f32 %v1090, %v1318
  %v1320 = vand.u32 %v896, 4294901760
  %1321 = vmatmul.f32.gmra.mxu0 %v1320
  %v1322 = vpop.f32.mrf.mxu0
  %v1323 = vadd.f32 %v1098, %v1322
  %v1324 = vand.u32 %v899, 4294901760
  %1325 = vmatmul.f32.gmra.mxu0 %v1324
  %v1326 = vpop.f32.mrf.mxu0
  %v1327 = vadd.f32 %v1106, %v1326
  %v1328 = vand.u32 %v902, 4294901760
  %1329 = vmatmul.f32.gmra.mxu0 %v1328
  %v1330 = vpop.f32.mrf.mxu0
  %v1331 = vadd.f32 %v1114, %v1330
  %v1332 = vand.u32 %v905, 4294901760
  %1333 = vmatmul.f32.gmra.mxu0 %v1332
  %v1334 = vpop.f32.mrf.mxu0
  %v1335 = vadd.f32 %v1122, %v1334
  %v1336 = vand.u32 %v908, 4294901760
  %1337 = vmatmul.f32.gmra.mxu0 %v1336
  %v1338 = vpop.f32.mrf.mxu0
  %v1339 = vadd.f32 %v1130, %v1338
  %v1340 = vand.u32 %v911, 4294901760
  %1341 = vmatmul.f32.gmra.mxu0 %v1340
  %v1342 = vpop.f32.mrf.mxu0
  %v1343 = vadd.f32 %v1138, %v1342
  %v1344 = vand.u32 %v914, 4294901760
  %1345 = vmatmul.f32.gmra.mxu0 %v1344
  %v1346 = vpop.f32.mrf.mxu0
  %v1347 = vadd.f32 %v1146, %v1346
  %v1348 = vand.u32 %v917, 4294901760
  %1349 = vmatmul.f32.gmra.mxu0 %v1348
  %v1350 = vpop.f32.mrf.mxu0
  %v1351 = vadd.f32 %v1154, %v1350
  %v1352 = vand.u32 %v920, 4294901760
  %1353 = vmatmul.f32.gmra.mxu0 %v1352
  %v1354 = vpop.f32.mrf.mxu0
  %v1355 = vadd.f32 %v1162, %v1354
  %v1356 = vand.u32 %v923, 4294901760
  %1357 = vmatmul.f32.gmra.mxu0 %v1356
  %v1358 = vpop.f32.mrf.mxu0
  %v1359 = vadd.f32 %v1170, %v1358
  %v1360 = vand.u32 %v926, 4294901760
  %1361 = vmatmul.f32.gmra.mxu0 %v1360
  %v1362 = vpop.f32.mrf.mxu0
  %v1363 = vadd.f32 %v1178, %v1362
  %v1364 = vand.u32 %v929, 4294901760
  %1365 = vmatmul.f32.gmra.mxu0 %v1364
  %v1366 = vpop.f32.mrf.mxu0
  %v1367 = vadd.f32 %v1186, %v1366
  %v1368 = vand.u32 %v932, 4294901760
  %1369 = vmatmul.f32.gmra.mxu0 %v1368
  %v1370 = vpop.f32.mrf.mxu0
  %v1371 = vadd.f32 %v1194, %v1370
  %v1372 = vand.u32 %v935, 4294901760
  %1373 = vmatmul.f32.gmra.mxu0 %v1372
  %v1374 = vpop.f32.mrf.mxu0
  %v1375 = vadd.f32 %v1202, %v1374
  %v1376 = vand.u32 %v938, 4294901760
  %1377 = vmatmul.f32.gmra.mxu0 %v1376
  %v1378 = vpop.f32.mrf.mxu0
  %v1379 = vadd.f32 %v1210, %v1378
  %v1380 = vand.u32 %v941, 4294901760
  %1381 = vmatmul.f32.gmra.mxu0 %v1380
  %v1382 = vpop.f32.mrf.mxu0
  %v1383 = vadd.f32 %v1218, %v1382
  %1384 = vdwg.mxu0
  %1385 = vmatpush.msra.mxu0 0.0
  %1386 = vmatpush.msra.mxu0 0.0
  %1387 = vmatpush.msra.mxu0 0.0
  %1388 = vmatpush.msra.mxu0 0.0
  %1389 = vmatpush.msra.mxu0 0.0
  %1390 = vmatpush.msra.mxu0 0.0
  %1391 = vmatpush.msra.mxu0 0.0
  %1392 = vmatpush.msra.mxu0 0.0
  %1393 = vmatpush.msra.mxu0 0.0
  %1394 = vmatpush.msra.mxu0 0.0
  %1395 = vmatpush.msra.mxu0 0.0
  %1396 = vmatpush.msra.mxu0 0.0
  %v1397 = vand.u32 %v842, 4294901760
  %v1398 = vsub.f32 %v842, %v1397
  %1399 = vmatpush.msra.mxu0 %v1398
  %v1400 = vand.u32 %v841, 4294901760
  %v1401 = vsub.f32 %v841, %v1400
  %1402 = vmatpush.msra.mxu0 %v1401
  %v1403 = vand.u32 %v840, 4294901760
  %v1404 = vsub.f32 %v840, %v1403
  %1405 = vmatpush.msra.mxu0 %v1404
  %v1406 = vand.u32 %v839, 4294901760
  %v1407 = vsub.f32 %v839, %v1406
  %1408 = vmatpush.msra.mxu0 %v1407
  %v1409 = vand.u32 %v848, 4294901760
  %v1410 = vsub.f32 %v848, %v1409
  %1411 = vmatmul.f32.gmra.mxu0 %v1410
  %v1412 = vpop.f32.mrf.mxu0
  %v1413 = vadd.f32 %v1259, %v1412
  %v1414 = vand.u32 %v851, 4294901760
  %v1415 = vsub.f32 %v851, %v1414
  %1416 = vmatmul.f32.gmra.mxu0 %v1415
  %v1417 = vpop.f32.mrf.mxu0
  %v1418 = vadd.f32 %v1263, %v1417
  %v1419 = vand.u32 %v854, 4294901760
  %v1420 = vsub.f32 %v854, %v1419
  %1421 = vmatmul.f32.gmra.mxu0 %v1420
  %v1422 = vpop.f32.mrf.mxu0
  %v1423 = vadd.f32 %v1267, %v1422
  %v1424 = vand.u32 %v857, 4294901760
  %v1425 = vsub.f32 %v857, %v1424
  %1426 = vmatmul.f32.gmra.mxu0 %v1425
  %v1427 = vpop.f32.mrf.mxu0
  %v1428 = vadd.f32 %v1271, %v1427
  %v1429 = vand.u32 %v860, 4294901760
  %v1430 = vsub.f32 %v860, %v1429
  %1431 = vmatmul.f32.gmra.mxu0 %v1430
  %v1432 = vpop.f32.mrf.mxu0
  %v1433 = vadd.f32 %v1275, %v1432
  %v1434 = vand.u32 %v863, 4294901760
  %v1435 = vsub.f32 %v863, %v1434
  %1436 = vmatmul.f32.gmra.mxu0 %v1435
  %v1437 = vpop.f32.mrf.mxu0
  %v1438 = vadd.f32 %v1279, %v1437
  %v1439 = vand.u32 %v866, 4294901760
  %v1440 = vsub.f32 %v866, %v1439
  %1441 = vmatmul.f32.gmra.mxu0 %v1440
  %v1442 = vpop.f32.mrf.mxu0
  %v1443 = vadd.f32 %v1283, %v1442
  %v1444 = vand.u32 %v869, 4294901760
  %v1445 = vsub.f32 %v869, %v1444
  %1446 = vmatmul.f32.gmra.mxu0 %v1445
  %v1447 = vpop.f32.mrf.mxu0
  %v1448 = vadd.f32 %v1287, %v1447
  %v1449 = vand.u32 %v872, 4294901760
  %v1450 = vsub.f32 %v872, %v1449
  %1451 = vmatmul.f32.gmra.mxu0 %v1450
  %v1452 = vpop.f32.mrf.mxu0
  %v1453 = vadd.f32 %v1291, %v1452
  %v1454 = vand.u32 %v875, 4294901760
  %v1455 = vsub.f32 %v875, %v1454
  %1456 = vmatmul.f32.gmra.mxu0 %v1455
  %v1457 = vpop.f32.mrf.mxu0
  %v1458 = vadd.f32 %v1295, %v1457
  %v1459 = vand.u32 %v878, 4294901760
  %v1460 = vsub.f32 %v878, %v1459
  %1461 = vmatmul.f32.gmra.mxu0 %v1460
  %v1462 = vpop.f32.mrf.mxu0
  %v1463 = vadd.f32 %v1299, %v1462
  %v1464 = vand.u32 %v881, 4294901760
  %v1465 = vsub.f32 %v881, %v1464
  %1466 = vmatmul.f32.gmra.mxu0 %v1465
  %v1467 = vpop.f32.mrf.mxu0
  %v1468 = vadd.f32 %v1303, %v1467
  %v1469 = vand.u32 %v884, 4294901760
  %v1470 = vsub.f32 %v884, %v1469
  %1471 = vmatmul.f32.gmra.mxu0 %v1470
  %v1472 = vpop.f32.mrf.mxu0
  %v1473 = vadd.f32 %v1307, %v1472
  %v1474 = vand.u32 %v887, 4294901760
  %v1475 = vsub.f32 %v887, %v1474
  %1476 = vmatmul.f32.gmra.mxu0 %v1475
  %v1477 = vpop.f32.mrf.mxu0
  %v1478 = vadd.f32 %v1311, %v1477
  %v1479 = vand.u32 %v890, 4294901760
  %v1480 = vsub.f32 %v890, %v1479
  %1481 = vmatmul.f32.gmra.mxu0 %v1480
  %v1482 = vpop.f32.mrf.mxu0
  %v1483 = vadd.f32 %v1315, %v1482
  %v1484 = vand.u32 %v893, 4294901760
  %v1485 = vsub.f32 %v893, %v1484
  %1486 = vmatmul.f32.gmra.mxu0 %v1485
  %v1487 = vpop.f32.mrf.mxu0
  %v1488 = vadd.f32 %v1319, %v1487
  %v1489 = vand.u32 %v896, 4294901760
  %v1490 = vsub.f32 %v896, %v1489
  %1491 = vmatmul.f32.gmra.mxu0 %v1490
  %v1492 = vpop.f32.mrf.mxu0
  %v1493 = vadd.f32 %v1323, %v1492
  %v1494 = vand.u32 %v899, 4294901760
  %v1495 = vsub.f32 %v899, %v1494
  %1496 = vmatmul.f32.gmra.mxu0 %v1495
  %v1497 = vpop.f32.mrf.mxu0
  %v1498 = vadd.f32 %v1327, %v1497
  %v1499 = vand.u32 %v902, 4294901760
  %v1500 = vsub.f32 %v902, %v1499
  %1501 = vmatmul.f32.gmra.mxu0 %v1500
  %v1502 = vpop.f32.mrf.mxu0
  %v1503 = vadd.f32 %v1331, %v1502
  %v1504 = vand.u32 %v905, 4294901760
  %v1505 = vsub.f32 %v905, %v1504
  %1506 = vmatmul.f32.gmra.mxu0 %v1505
  %v1507 = vpop.f32.mrf.mxu0
  %v1508 = vadd.f32 %v1335, %v1507
  %v1509 = vand.u32 %v908, 4294901760
  %v1510 = vsub.f32 %v908, %v1509
  %1511 = vmatmul.f32.gmra.mxu0 %v1510
  %v1512 = vpop.f32.mrf.mxu0
  %v1513 = vadd.f32 %v1339, %v1512
  %v1514 = vand.u32 %v911, 4294901760
  %v1515 = vsub.f32 %v911, %v1514
  %1516 = vmatmul.f32.gmra.mxu0 %v1515
  %v1517 = vpop.f32.mrf.mxu0
  %v1518 = vadd.f32 %v1343, %v1517
  %v1519 = vand.u32 %v914, 4294901760
  %v1520 = vsub.f32 %v914, %v1519
  %1521 = vmatmul.f32.gmra.mxu0 %v1520
  %v1522 = vpop.f32.mrf.mxu0
  %v1523 = vadd.f32 %v1347, %v1522
  %v1524 = vand.u32 %v917, 4294901760
  %v1525 = vsub.f32 %v917, %v1524
  %1526 = vmatmul.f32.gmra.mxu0 %v1525
  %v1527 = vpop.f32.mrf.mxu0
  %v1528 = vadd.f32 %v1351, %v1527
  %v1529 = vand.u32 %v920, 4294901760
  %v1530 = vsub.f32 %v920, %v1529
  %1531 = vmatmul.f32.gmra.mxu0 %v1530
  %v1532 = vpop.f32.mrf.mxu0
  %v1533 = vadd.f32 %v1355, %v1532
  %v1534 = vand.u32 %v923, 4294901760
  %v1535 = vsub.f32 %v923, %v1534
  %1536 = vmatmul.f32.gmra.mxu0 %v1535
  %v1537 = vpop.f32.mrf.mxu0
  %v1538 = vadd.f32 %v1359, %v1537
  %v1539 = vand.u32 %v926, 4294901760
  %v1540 = vsub.f32 %v926, %v1539
  %1541 = vmatmul.f32.gmra.mxu0 %v1540
  %v1542 = vpop.f32.mrf.mxu0
  %v1543 = vadd.f32 %v1363, %v1542
  %v1544 = vand.u32 %v929, 4294901760
  %v1545 = vsub.f32 %v929, %v1544
  %1546 = vmatmul.f32.gmra.mxu0 %v1545
  %v1547 = vpop.f32.mrf.mxu0
  %v1548 = vadd.f32 %v1367, %v1547
  %v1549 = vand.u32 %v932, 4294901760
  %v1550 = vsub.f32 %v932, %v1549
  %1551 = vmatmul.f32.gmra.mxu0 %v1550
  %v1552 = vpop.f32.mrf.mxu0
  %v1553 = vadd.f32 %v1371, %v1552
  %v1554 = vand.u32 %v935, 4294901760
  %v1555 = vsub.f32 %v935, %v1554
  %1556 = vmatmul.f32.gmra.mxu0 %v1555
  %v1557 = vpop.f32.mrf.mxu0
  %v1558 = vadd.f32 %v1375, %v1557
  %v1559 = vand.u32 %v938, 4294901760
  %v1560 = vsub.f32 %v938, %v1559
  %1561 = vmatmul.f32.gmra.mxu0 %v1560
  %v1562 = vpop.f32.mrf.mxu0
  %v1563 = vadd.f32 %v1379, %v1562
  %v1564 = vand.u32 %v941, 4294901760
  %v1565 = vsub.f32 %v941, %v1564
  %1566 = vmatmul.f32.gmra.mxu0 %v1565
  %v1567 = vpop.f32.mrf.mxu0
  %v1568 = vadd.f32 %v1383, %v1567
  %1569 = vdwg.mxu0
  %1570 = vmatpush.msra.mxu0 0.0
  %1571 = vmatpush.msra.mxu0 0.0
  %1572 = vmatpush.msra.mxu0 0.0
  %1573 = vmatpush.msra.mxu0 0.0
  %1574 = vmatpush.msra.mxu0 0.0
  %1575 = vmatpush.msra.mxu0 0.0
  %1576 = vmatpush.msra.mxu0 0.0
  %1577 = vmatpush.msra.mxu0 0.0
  %1578 = vmatpush.msra.mxu0 0.0
  %1579 = vmatpush.msra.mxu0 0.0
  %1580 = vmatpush.msra.mxu0 0.0
  %1581 = vmatpush.msra.mxu0 0.0
  %v1582 = vand.u32 %v842, 4294901760
  %1583 = vmatpush.msra.mxu0 %v1582
  %v1584 = vand.u32 %v841, 4294901760
  %1585 = vmatpush.msra.mxu0 %v1584
  %v1586 = vand.u32 %v840, 4294901760
  %1587 = vmatpush.msra.mxu0 %v1586
  %v1588 = vand.u32 %v839, 4294901760
  %1589 = vmatpush.msra.mxu0 %v1588
  %v1590 = vand.u32 %v848, 4294901760
  %v1591 = vsub.f32 %v848, %v1590
  %v1592 = vand.u32 %v1591, 4294901760
  %1593 = vmatmul.f32.gmra.mxu0 %v1592
  %v1594 = vpop.f32.mrf.mxu0
  %v1595 = vadd.f32 %v1413, %v1594
  %v1596 = vand.u32 %v851, 4294901760
  %v1597 = vsub.f32 %v851, %v1596
  %v1598 = vand.u32 %v1597, 4294901760
  %1599 = vmatmul.f32.gmra.mxu0 %v1598
  %v1600 = vpop.f32.mrf.mxu0
  %v1601 = vadd.f32 %v1418, %v1600
  %v1602 = vand.u32 %v854, 4294901760
  %v1603 = vsub.f32 %v854, %v1602
  %v1604 = vand.u32 %v1603, 4294901760
  %1605 = vmatmul.f32.gmra.mxu0 %v1604
  %v1606 = vpop.f32.mrf.mxu0
  %v1607 = vadd.f32 %v1423, %v1606
  %v1608 = vand.u32 %v857, 4294901760
  %v1609 = vsub.f32 %v857, %v1608
  %v1610 = vand.u32 %v1609, 4294901760
  %1611 = vmatmul.f32.gmra.mxu0 %v1610
  %v1612 = vpop.f32.mrf.mxu0
  %v1613 = vadd.f32 %v1428, %v1612
  %v1614 = vand.u32 %v860, 4294901760
  %v1615 = vsub.f32 %v860, %v1614
  %v1616 = vand.u32 %v1615, 4294901760
  %1617 = vmatmul.f32.gmra.mxu0 %v1616
  %v1618 = vpop.f32.mrf.mxu0
  %v1619 = vadd.f32 %v1433, %v1618
  %v1620 = vand.u32 %v863, 4294901760
  %v1621 = vsub.f32 %v863, %v1620
  %v1622 = vand.u32 %v1621, 4294901760
  %1623 = vmatmul.f32.gmra.mxu0 %v1622
  %v1624 = vpop.f32.mrf.mxu0
  %v1625 = vadd.f32 %v1438, %v1624
  %v1626 = vand.u32 %v866, 4294901760
  %v1627 = vsub.f32 %v866, %v1626
  %v1628 = vand.u32 %v1627, 4294901760
  %1629 = vmatmul.f32.gmra.mxu0 %v1628
  %v1630 = vpop.f32.mrf.mxu0
  %v1631 = vadd.f32 %v1443, %v1630
  %v1632 = vand.u32 %v869, 4294901760
  %v1633 = vsub.f32 %v869, %v1632
  %v1634 = vand.u32 %v1633, 4294901760
  %1635 = vmatmul.f32.gmra.mxu0 %v1634
  %v1636 = vpop.f32.mrf.mxu0
  %v1637 = vadd.f32 %v1448, %v1636
  %v1638 = vand.u32 %v872, 4294901760
  %v1639 = vsub.f32 %v872, %v1638
  %v1640 = vand.u32 %v1639, 4294901760
  %1641 = vmatmul.f32.gmra.mxu0 %v1640
  %v1642 = vpop.f32.mrf.mxu0
  %v1643 = vadd.f32 %v1453, %v1642
  %v1644 = vand.u32 %v875, 4294901760
  %v1645 = vsub.f32 %v875, %v1644
  %v1646 = vand.u32 %v1645, 4294901760
  %1647 = vmatmul.f32.gmra.mxu0 %v1646
  %v1648 = vpop.f32.mrf.mxu0
  %v1649 = vadd.f32 %v1458, %v1648
  %v1650 = vand.u32 %v878, 4294901760
  %v1651 = vsub.f32 %v878, %v1650
  %v1652 = vand.u32 %v1651, 4294901760
  %1653 = vmatmul.f32.gmra.mxu0 %v1652
  %v1654 = vpop.f32.mrf.mxu0
  %v1655 = vadd.f32 %v1463, %v1654
  %v1656 = vand.u32 %v881, 4294901760
  %v1657 = vsub.f32 %v881, %v1656
  %v1658 = vand.u32 %v1657, 4294901760
  %1659 = vmatmul.f32.gmra.mxu0 %v1658
  %v1660 = vpop.f32.mrf.mxu0
  %v1661 = vadd.f32 %v1468, %v1660
  %v1662 = vand.u32 %v884, 4294901760
  %v1663 = vsub.f32 %v884, %v1662
  %v1664 = vand.u32 %v1663, 4294901760
  %1665 = vmatmul.f32.gmra.mxu0 %v1664
  %v1666 = vpop.f32.mrf.mxu0
  %v1667 = vadd.f32 %v1473, %v1666
  %v1668 = vand.u32 %v887, 4294901760
  %v1669 = vsub.f32 %v887, %v1668
  %v1670 = vand.u32 %v1669, 4294901760
  %1671 = vmatmul.f32.gmra.mxu0 %v1670
  %v1672 = vpop.f32.mrf.mxu0
  %v1673 = vadd.f32 %v1478, %v1672
  %v1674 = vand.u32 %v890, 4294901760
  %v1675 = vsub.f32 %v890, %v1674
  %v1676 = vand.u32 %v1675, 4294901760
  %1677 = vmatmul.f32.gmra.mxu0 %v1676
  %v1678 = vpop.f32.mrf.mxu0
  %v1679 = vadd.f32 %v1483, %v1678
  %v1680 = vand.u32 %v893, 4294901760
  %v1681 = vsub.f32 %v893, %v1680
  %v1682 = vand.u32 %v1681, 4294901760
  %1683 = vmatmul.f32.gmra.mxu0 %v1682
  %v1684 = vpop.f32.mrf.mxu0
  %v1685 = vadd.f32 %v1488, %v1684
  %v1686 = vand.u32 %v896, 4294901760
  %v1687 = vsub.f32 %v896, %v1686
  %v1688 = vand.u32 %v1687, 4294901760
  %1689 = vmatmul.f32.gmra.mxu0 %v1688
  %v1690 = vpop.f32.mrf.mxu0
  %v1691 = vadd.f32 %v1493, %v1690
  %v1692 = vand.u32 %v899, 4294901760
  %v1693 = vsub.f32 %v899, %v1692
  %v1694 = vand.u32 %v1693, 4294901760
  %1695 = vmatmul.f32.gmra.mxu0 %v1694
  %v1696 = vpop.f32.mrf.mxu0
  %v1697 = vadd.f32 %v1498, %v1696
  %v1698 = vand.u32 %v902, 4294901760
  %v1699 = vsub.f32 %v902, %v1698
  %v1700 = vand.u32 %v1699, 4294901760
  %1701 = vmatmul.f32.gmra.mxu0 %v1700
  %v1702 = vpop.f32.mrf.mxu0
  %v1703 = vadd.f32 %v1503, %v1702
  %v1704 = vand.u32 %v905, 4294901760
  %v1705 = vsub.f32 %v905, %v1704
  %v1706 = vand.u32 %v1705, 4294901760
  %1707 = vmatmul.f32.gmra.mxu0 %v1706
  %v1708 = vpop.f32.mrf.mxu0
  %v1709 = vadd.f32 %v1508, %v1708
  %v1710 = vand.u32 %v908, 4294901760
  %v1711 = vsub.f32 %v908, %v1710
  %v1712 = vand.u32 %v1711, 4294901760
  %1713 = vmatmul.f32.gmra.mxu0 %v1712
  %v1714 = vpop.f32.mrf.mxu0
  %v1715 = vadd.f32 %v1513, %v1714
  %v1716 = vand.u32 %v911, 4294901760
  %v1717 = vsub.f32 %v911, %v1716
  %v1718 = vand.u32 %v1717, 4294901760
  %1719 = vmatmul.f32.gmra.mxu0 %v1718
  %v1720 = vpop.f32.mrf.mxu0
  %v1721 = vadd.f32 %v1518, %v1720
  %v1722 = vand.u32 %v914, 4294901760
  %v1723 = vsub.f32 %v914, %v1722
  %v1724 = vand.u32 %v1723, 4294901760
  %1725 = vmatmul.f32.gmra.mxu0 %v1724
  %v1726 = vpop.f32.mrf.mxu0
  %v1727 = vadd.f32 %v1523, %v1726
  %v1728 = vand.u32 %v917, 4294901760
  %v1729 = vsub.f32 %v917, %v1728
  %v1730 = vand.u32 %v1729, 4294901760
  %1731 = vmatmul.f32.gmra.mxu0 %v1730
  %v1732 = vpop.f32.mrf.mxu0
  %v1733 = vadd.f32 %v1528, %v1732
  %v1734 = vand.u32 %v920, 4294901760
  %v1735 = vsub.f32 %v920, %v1734
  %v1736 = vand.u32 %v1735, 4294901760
  %1737 = vmatmul.f32.gmra.mxu0 %v1736
  %v1738 = vpop.f32.mrf.mxu0
  %v1739 = vadd.f32 %v1533, %v1738
  %v1740 = vand.u32 %v923, 4294901760
  %v1741 = vsub.f32 %v923, %v1740
  %v1742 = vand.u32 %v1741, 4294901760
  %1743 = vmatmul.f32.gmra.mxu0 %v1742
  %v1744 = vpop.f32.mrf.mxu0
  %v1745 = vadd.f32 %v1538, %v1744
  %v1746 = vand.u32 %v926, 4294901760
  %v1747 = vsub.f32 %v926, %v1746
  %v1748 = vand.u32 %v1747, 4294901760
  %1749 = vmatmul.f32.gmra.mxu0 %v1748
  %v1750 = vpop.f32.mrf.mxu0
  %v1751 = vadd.f32 %v1543, %v1750
  %v1752 = vand.u32 %v929, 4294901760
  %v1753 = vsub.f32 %v929, %v1752
  %v1754 = vand.u32 %v1753, 4294901760
  %1755 = vmatmul.f32.gmra.mxu0 %v1754
  %v1756 = vpop.f32.mrf.mxu0
  %v1757 = vadd.f32 %v1548, %v1756
  %v1758 = vand.u32 %v932, 4294901760
  %v1759 = vsub.f32 %v932, %v1758
  %v1760 = vand.u32 %v1759, 4294901760
  %1761 = vmatmul.f32.gmra.mxu0 %v1760
  %v1762 = vpop.f32.mrf.mxu0
  %v1763 = vadd.f32 %v1553, %v1762
  %v1764 = vand.u32 %v935, 4294901760
  %v1765 = vsub.f32 %v935, %v1764
  %v1766 = vand.u32 %v1765, 4294901760
  %1767 = vmatmul.f32.gmra.mxu0 %v1766
  %v1768 = vpop.f32.mrf.mxu0
  %v1769 = vadd.f32 %v1558, %v1768
  %v1770 = vand.u32 %v938, 4294901760
  %v1771 = vsub.f32 %v938, %v1770
  %v1772 = vand.u32 %v1771, 4294901760
  %1773 = vmatmul.f32.gmra.mxu0 %v1772
  %v1774 = vpop.f32.mrf.mxu0
  %v1775 = vadd.f32 %v1563, %v1774
  %v1776 = vand.u32 %v941, 4294901760
  %v1777 = vsub.f32 %v941, %v1776
  %v1778 = vand.u32 %v1777, 4294901760
  %1779 = vmatmul.f32.gmra.mxu0 %v1778
  %v1780 = vpop.f32.mrf.mxu0
  %v1781 = vadd.f32 %v1568, %v1780
  %1782 = vdwg.mxu0
  %1783 = vmatpush.msra.mxu0 0.0
  %1784 = vmatpush.msra.mxu0 0.0
  %1785 = vmatpush.msra.mxu0 0.0
  %1786 = vmatpush.msra.mxu0 0.0
  %1787 = vmatpush.msra.mxu0 0.0
  %1788 = vmatpush.msra.mxu0 0.0
  %1789 = vmatpush.msra.mxu0 0.0
  %1790 = vmatpush.msra.mxu0 0.0
  %1791 = vmatpush.msra.mxu0 0.0
  %1792 = vmatpush.msra.mxu0 0.0
  %1793 = vmatpush.msra.mxu0 0.0
  %1794 = vmatpush.msra.mxu0 0.0
  %v1795 = vand.u32 %v842, 4294901760
  %v1796 = vsub.f32 %v842, %v1795
  %v1797 = vand.u32 %v1796, 4294901760
  %1798 = vmatpush.msra.mxu0 %v1797
  %v1799 = vand.u32 %v841, 4294901760
  %v1800 = vsub.f32 %v841, %v1799
  %v1801 = vand.u32 %v1800, 4294901760
  %1802 = vmatpush.msra.mxu0 %v1801
  %v1803 = vand.u32 %v840, 4294901760
  %v1804 = vsub.f32 %v840, %v1803
  %v1805 = vand.u32 %v1804, 4294901760
  %1806 = vmatpush.msra.mxu0 %v1805
  %v1807 = vand.u32 %v839, 4294901760
  %v1808 = vsub.f32 %v839, %v1807
  %v1809 = vand.u32 %v1808, 4294901760
  %1810 = vmatpush.msra.mxu0 %v1809
  %v1811 = vand.u32 %v848, 4294901760
  %1812 = vmatmul.f32.gmra.mxu0 %v1811
  %v1813 = vpop.f32.mrf.mxu0
  %v1814 = vadd.f32 %v1595, %v1813
  %v1815 = vand.u32 %v851, 4294901760
  %1816 = vmatmul.f32.gmra.mxu0 %v1815
  %v1817 = vpop.f32.mrf.mxu0
  %v1818 = vadd.f32 %v1601, %v1817
  %v1819 = vand.u32 %v854, 4294901760
  %1820 = vmatmul.f32.gmra.mxu0 %v1819
  %v1821 = vpop.f32.mrf.mxu0
  %v1822 = vadd.f32 %v1607, %v1821
  %v1823 = vand.u32 %v857, 4294901760
  %1824 = vmatmul.f32.gmra.mxu0 %v1823
  %v1825 = vpop.f32.mrf.mxu0
  %v1826 = vadd.f32 %v1613, %v1825
  %v1827 = vand.u32 %v860, 4294901760
  %1828 = vmatmul.f32.gmra.mxu0 %v1827
  %v1829 = vpop.f32.mrf.mxu0
  %v1830 = vadd.f32 %v1619, %v1829
  %v1831 = vand.u32 %v863, 4294901760
  %1832 = vmatmul.f32.gmra.mxu0 %v1831
  %v1833 = vpop.f32.mrf.mxu0
  %v1834 = vadd.f32 %v1625, %v1833
  %v1835 = vand.u32 %v866, 4294901760
  %1836 = vmatmul.f32.gmra.mxu0 %v1835
  %v1837 = vpop.f32.mrf.mxu0
  %v1838 = vadd.f32 %v1631, %v1837
  %v1839 = vand.u32 %v869, 4294901760
  %1840 = vmatmul.f32.gmra.mxu0 %v1839
  %v1841 = vpop.f32.mrf.mxu0
  %v1842 = vadd.f32 %v1637, %v1841
  %v1843 = vand.u32 %v872, 4294901760
  %1844 = vmatmul.f32.gmra.mxu0 %v1843
  %v1845 = vpop.f32.mrf.mxu0
  %v1846 = vadd.f32 %v1643, %v1845
  %v1847 = vand.u32 %v875, 4294901760
  %1848 = vmatmul.f32.gmra.mxu0 %v1847
  %v1849 = vpop.f32.mrf.mxu0
  %v1850 = vadd.f32 %v1649, %v1849
  %v1851 = vand.u32 %v878, 4294901760
  %1852 = vmatmul.f32.gmra.mxu0 %v1851
  %v1853 = vpop.f32.mrf.mxu0
  %v1854 = vadd.f32 %v1655, %v1853
  %v1855 = vand.u32 %v881, 4294901760
  %1856 = vmatmul.f32.gmra.mxu0 %v1855
  %v1857 = vpop.f32.mrf.mxu0
  %v1858 = vadd.f32 %v1661, %v1857
  %v1859 = vand.u32 %v884, 4294901760
  %1860 = vmatmul.f32.gmra.mxu0 %v1859
  %v1861 = vpop.f32.mrf.mxu0
  %v1862 = vadd.f32 %v1667, %v1861
  %v1863 = vand.u32 %v887, 4294901760
  %1864 = vmatmul.f32.gmra.mxu0 %v1863
  %v1865 = vpop.f32.mrf.mxu0
  %v1866 = vadd.f32 %v1673, %v1865
  %v1867 = vand.u32 %v890, 4294901760
  %1868 = vmatmul.f32.gmra.mxu0 %v1867
  %v1869 = vpop.f32.mrf.mxu0
  %v1870 = vadd.f32 %v1679, %v1869
  %v1871 = vand.u32 %v893, 4294901760
  %1872 = vmatmul.f32.gmra.mxu0 %v1871
  %v1873 = vpop.f32.mrf.mxu0
  %v1874 = vadd.f32 %v1685, %v1873
  %v1875 = vand.u32 %v896, 4294901760
  %1876 = vmatmul.f32.gmra.mxu0 %v1875
  %v1877 = vpop.f32.mrf.mxu0
  %v1878 = vadd.f32 %v1691, %v1877
  %v1879 = vand.u32 %v899, 4294901760
  %1880 = vmatmul.f32.gmra.mxu0 %v1879
  %v1881 = vpop.f32.mrf.mxu0
  %v1882 = vadd.f32 %v1697, %v1881
  %v1883 = vand.u32 %v902, 4294901760
  %1884 = vmatmul.f32.gmra.mxu0 %v1883
  %v1885 = vpop.f32.mrf.mxu0
  %v1886 = vadd.f32 %v1703, %v1885
  %v1887 = vand.u32 %v905, 4294901760
  %1888 = vmatmul.f32.gmra.mxu0 %v1887
  %v1889 = vpop.f32.mrf.mxu0
  %v1890 = vadd.f32 %v1709, %v1889
  %v1891 = vand.u32 %v908, 4294901760
  %1892 = vmatmul.f32.gmra.mxu0 %v1891
  %v1893 = vpop.f32.mrf.mxu0
  %v1894 = vadd.f32 %v1715, %v1893
  %v1895 = vand.u32 %v911, 4294901760
  %1896 = vmatmul.f32.gmra.mxu0 %v1895
  %v1897 = vpop.f32.mrf.mxu0
  %v1898 = vadd.f32 %v1721, %v1897
  %v1899 = vand.u32 %v914, 4294901760
  %1900 = vmatmul.f32.gmra.mxu0 %v1899
  %v1901 = vpop.f32.mrf.mxu0
  %v1902 = vadd.f32 %v1727, %v1901
  %v1903 = vand.u32 %v917, 4294901760
  %1904 = vmatmul.f32.gmra.mxu0 %v1903
  %v1905 = vpop.f32.mrf.mxu0
  %v1906 = vadd.f32 %v1733, %v1905
  %v1907 = vand.u32 %v920, 4294901760
  %1908 = vmatmul.f32.gmra.mxu0 %v1907
  %v1909 = vpop.f32.mrf.mxu0
  %v1910 = vadd.f32 %v1739, %v1909
  %v1911 = vand.u32 %v923, 4294901760
  %1912 = vmatmul.f32.gmra.mxu0 %v1911
  %v1913 = vpop.f32.mrf.mxu0
  %v1914 = vadd.f32 %v1745, %v1913
  %v1915 = vand.u32 %v926, 4294901760
  %1916 = vmatmul.f32.gmra.mxu0 %v1915
  %v1917 = vpop.f32.mrf.mxu0
  %v1918 = vadd.f32 %v1751, %v1917
  %v1919 = vand.u32 %v929, 4294901760
  %1920 = vmatmul.f32.gmra.mxu0 %v1919
  %v1921 = vpop.f32.mrf.mxu0
  %v1922 = vadd.f32 %v1757, %v1921
  %v1923 = vand.u32 %v932, 4294901760
  %1924 = vmatmul.f32.gmra.mxu0 %v1923
  %v1925 = vpop.f32.mrf.mxu0
  %v1926 = vadd.f32 %v1763, %v1925
  %v1927 = vand.u32 %v935, 4294901760
  %1928 = vmatmul.f32.gmra.mxu0 %v1927
  %v1929 = vpop.f32.mrf.mxu0
  %v1930 = vadd.f32 %v1769, %v1929
  %v1931 = vand.u32 %v938, 4294901760
  %1932 = vmatmul.f32.gmra.mxu0 %v1931
  %v1933 = vpop.f32.mrf.mxu0
  %v1934 = vadd.f32 %v1775, %v1933
  %v1935 = vand.u32 %v941, 4294901760
  %1936 = vmatmul.f32.gmra.mxu0 %v1935
  %v1937 = vpop.f32.mrf.mxu0
  %v1938 = vadd.f32 %v1781, %v1937
  %1939 = vdwg.mxu0
  %1940 = vmatpush.msra.mxu0 0.0
  %1941 = vmatpush.msra.mxu0 0.0
  %1942 = vmatpush.msra.mxu0 0.0
  %1943 = vmatpush.msra.mxu0 0.0
  %1944 = vmatpush.msra.mxu0 0.0
  %1945 = vmatpush.msra.mxu0 0.0
  %1946 = vmatpush.msra.mxu0 0.0
  %1947 = vmatpush.msra.mxu0 0.0
  %1948 = vmatpush.msra.mxu0 0.0
  %1949 = vmatpush.msra.mxu0 0.0
  %1950 = vmatpush.msra.mxu0 0.0
  %1951 = vmatpush.msra.mxu0 0.0
  %v1952 = vand.u32 %v842, 4294901760
  %1953 = vmatpush.msra.mxu0 %v1952
  %v1954 = vand.u32 %v841, 4294901760
  %1955 = vmatpush.msra.mxu0 %v1954
  %v1956 = vand.u32 %v840, 4294901760
  %1957 = vmatpush.msra.mxu0 %v1956
  %v1958 = vand.u32 %v839, 4294901760
  %1959 = vmatpush.msra.mxu0 %v1958
  %v1960 = vand.u32 %v848, 4294901760
  %1961 = vmatmul.f32.gmra.mxu0 %v1960
  %v1962 = vpop.f32.mrf.mxu0
  %v1963 = vadd.f32 %v1814, %v1962
  %v1964 = vand.u32 %v851, 4294901760
  %1965 = vmatmul.f32.gmra.mxu0 %v1964
  %v1966 = vpop.f32.mrf.mxu0
  %v1967 = vadd.f32 %v1818, %v1966
  %v1968 = vand.u32 %v854, 4294901760
  %1969 = vmatmul.f32.gmra.mxu0 %v1968
  %v1970 = vpop.f32.mrf.mxu0
  %v1971 = vadd.f32 %v1822, %v1970
  %v1972 = vand.u32 %v857, 4294901760
  %1973 = vmatmul.f32.gmra.mxu0 %v1972
  %v1974 = vpop.f32.mrf.mxu0
  %v1975 = vadd.f32 %v1826, %v1974
  %v1976 = vand.u32 %v860, 4294901760
  %1977 = vmatmul.f32.gmra.mxu0 %v1976
  %v1978 = vpop.f32.mrf.mxu0
  %v1979 = vadd.f32 %v1830, %v1978
  %v1980 = vand.u32 %v863, 4294901760
  %1981 = vmatmul.f32.gmra.mxu0 %v1980
  %v1982 = vpop.f32.mrf.mxu0
  %v1983 = vadd.f32 %v1834, %v1982
  %v1984 = vand.u32 %v866, 4294901760
  %1985 = vmatmul.f32.gmra.mxu0 %v1984
  %v1986 = vpop.f32.mrf.mxu0
  %v1987 = vadd.f32 %v1838, %v1986
  %v1988 = vand.u32 %v869, 4294901760
  %1989 = vmatmul.f32.gmra.mxu0 %v1988
  %v1990 = vpop.f32.mrf.mxu0
  %v1991 = vadd.f32 %v1842, %v1990
  %v1992 = vand.u32 %v872, 4294901760
  %1993 = vmatmul.f32.gmra.mxu0 %v1992
  %v1994 = vpop.f32.mrf.mxu0
  %v1995 = vadd.f32 %v1846, %v1994
  %v1996 = vand.u32 %v875, 4294901760
  %1997 = vmatmul.f32.gmra.mxu0 %v1996
  %v1998 = vpop.f32.mrf.mxu0
  %v1999 = vadd.f32 %v1850, %v1998
  %v2000 = vand.u32 %v878, 4294901760
  %2001 = vmatmul.f32.gmra.mxu0 %v2000
  %v2002 = vpop.f32.mrf.mxu0
  %v2003 = vadd.f32 %v1854, %v2002
  %v2004 = vand.u32 %v881, 4294901760
  %2005 = vmatmul.f32.gmra.mxu0 %v2004
  %v2006 = vpop.f32.mrf.mxu0
  %v2007 = vadd.f32 %v1858, %v2006
  %v2008 = vand.u32 %v884, 4294901760
  %2009 = vmatmul.f32.gmra.mxu0 %v2008
  %v2010 = vpop.f32.mrf.mxu0
  %v2011 = vadd.f32 %v1862, %v2010
  %v2012 = vand.u32 %v887, 4294901760
  %2013 = vmatmul.f32.gmra.mxu0 %v2012
  %v2014 = vpop.f32.mrf.mxu0
  %v2015 = vadd.f32 %v1866, %v2014
  %v2016 = vand.u32 %v890, 4294901760
  %2017 = vmatmul.f32.gmra.mxu0 %v2016
  %v2018 = vpop.f32.mrf.mxu0
  %v2019 = vadd.f32 %v1870, %v2018
  %v2020 = vand.u32 %v893, 4294901760
  %2021 = vmatmul.f32.gmra.mxu0 %v2020
  %v2022 = vpop.f32.mrf.mxu0
  %v2023 = vadd.f32 %v1874, %v2022
  %v2024 = vand.u32 %v896, 4294901760
  %2025 = vmatmul.f32.gmra.mxu0 %v2024
  %v2026 = vpop.f32.mrf.mxu0
  %v2027 = vadd.f32 %v1878, %v2026
  %v2028 = vand.u32 %v899, 4294901760
  %2029 = vmatmul.f32.gmra.mxu0 %v2028
  %v2030 = vpop.f32.mrf.mxu0
  %v2031 = vadd.f32 %v1882, %v2030
  %v2032 = vand.u32 %v902, 4294901760
  %2033 = vmatmul.f32.gmra.mxu0 %v2032
  %v2034 = vpop.f32.mrf.mxu0
  %v2035 = vadd.f32 %v1886, %v2034
  %v2036 = vand.u32 %v905, 4294901760
  %2037 = vmatmul.f32.gmra.mxu0 %v2036
  %v2038 = vpop.f32.mrf.mxu0
  %v2039 = vadd.f32 %v1890, %v2038
  %v2040 = vand.u32 %v908, 4294901760
  %2041 = vmatmul.f32.gmra.mxu0 %v2040
  %v2042 = vpop.f32.mrf.mxu0
  %v2043 = vadd.f32 %v1894, %v2042
  %v2044 = vand.u32 %v911, 4294901760
  %2045 = vmatmul.f32.gmra.mxu0 %v2044
  %v2046 = vpop.f32.mrf.mxu0
  %v2047 = vadd.f32 %v1898, %v2046
  %v2048 = vand.u32 %v914, 4294901760
  %2049 = vmatmul.f32.gmra.mxu0 %v2048
  %v2050 = vpop.f32.mrf.mxu0
  %v2051 = vadd.f32 %v1902, %v2050
  %v2052 = vand.u32 %v917, 4294901760
  %2053 = vmatmul.f32.gmra.mxu0 %v2052
  %v2054 = vpop.f32.mrf.mxu0
  %v2055 = vadd.f32 %v1906, %v2054
  %v2056 = vand.u32 %v920, 4294901760
  %2057 = vmatmul.f32.gmra.mxu0 %v2056
  %v2058 = vpop.f32.mrf.mxu0
  %v2059 = vadd.f32 %v1910, %v2058
  %v2060 = vand.u32 %v923, 4294901760
  %2061 = vmatmul.f32.gmra.mxu0 %v2060
  %v2062 = vpop.f32.mrf.mxu0
  %v2063 = vadd.f32 %v1914, %v2062
  %v2064 = vand.u32 %v926, 4294901760
  %2065 = vmatmul.f32.gmra.mxu0 %v2064
  %v2066 = vpop.f32.mrf.mxu0
  %v2067 = vadd.f32 %v1918, %v2066
  %v2068 = vand.u32 %v929, 4294901760
  %2069 = vmatmul.f32.gmra.mxu0 %v2068
  %v2070 = vpop.f32.mrf.mxu0
  %v2071 = vadd.f32 %v1922, %v2070
  %v2072 = vand.u32 %v932, 4294901760
  %2073 = vmatmul.f32.gmra.mxu0 %v2072
  %v2074 = vpop.f32.mrf.mxu0
  %v2075 = vadd.f32 %v1926, %v2074
  %v2076 = vand.u32 %v935, 4294901760
  %2077 = vmatmul.f32.gmra.mxu0 %v2076
  %v2078 = vpop.f32.mrf.mxu0
  %v2079 = vadd.f32 %v1930, %v2078
  %v2080 = vand.u32 %v938, 4294901760
  %2081 = vmatmul.f32.gmra.mxu0 %v2080
  %v2082 = vpop.f32.mrf.mxu0
  %v2083 = vadd.f32 %v1934, %v2082
  %v2084 = vand.u32 %v941, 4294901760
  %2085 = vmatmul.f32.gmra.mxu0 %v2084
  %v2086 = vpop.f32.mrf.mxu0
  %v2087 = vadd.f32 %v1938, %v2086
  %2088 = vdwg.mxu0
  %v2089 = vld [vmem:[%s5] sm:$0x1]
  %v2091 = vperm.slane %v2089, 0
  %v2093 = vmul.f32 %v1963, %v2091
  %v2094 = vmul.f32 %v1967, %v2091
  %v2095 = vmul.f32 %v1971, %v2091
  %v2096 = vmul.f32 %v1975, %v2091
  %v2097 = vmul.f32 %v1979, %v2091
  %v2098 = vmul.f32 %v1983, %v2091
  %v2099 = vmul.f32 %v1987, %v2091
  %v2100 = vmul.f32 %v1991, %v2091
  %v2101 = vmul.f32 %v1995, %v2091
  %v2102 = vmul.f32 %v1999, %v2091
  %v2103 = vmul.f32 %v2003, %v2091
  %v2104 = vmul.f32 %v2007, %v2091
  %v2105 = vmul.f32 %v2011, %v2091
  %v2106 = vmul.f32 %v2015, %v2091
  %v2107 = vmul.f32 %v2019, %v2091
  %v2108 = vmul.f32 %v2023, %v2091
  %v2109 = vmul.f32 %v2027, %v2091
  %v2110 = vmul.f32 %v2031, %v2091
  %v2111 = vmul.f32 %v2035, %v2091
  %v2112 = vmul.f32 %v2039, %v2091
  %v2113 = vmul.f32 %v2043, %v2091
  %v2114 = vmul.f32 %v2047, %v2091
  %v2115 = vmul.f32 %v2051, %v2091
  %v2116 = vmul.f32 %v2055, %v2091
  %v2117 = vmul.f32 %v2059, %v2091
  %v2118 = vmul.f32 %v2063, %v2091
  %v2119 = vmul.f32 %v2067, %v2091
  %v2120 = vmul.f32 %v2071, %v2091
  %v2121 = vmul.f32 %v2075, %v2091
  %v2122 = vmul.f32 %v2079, %v2091
  %v2123 = vmul.f32 %v2083, %v2091
  %v2124 = vmul.f32 %v2087, %v2091
  %vm2125 = vcmask 785408
  %2126 = vst.msk [vmem:[%s6] sm:$0xff] %vm2125, %v2093
  %2127 = vst.msk [vmem:[%s6 + $0x8] sm:$0xff] %vm2125, %v2094
  %2128 = vst.msk [vmem:[%s6 + $0x10] sm:$0xff] %vm2125, %v2095
  %2129 = vst.msk [vmem:[%s6 + $0x18] sm:$0xff] %vm2125, %v2096
  %2130 = vst.msk [vmem:[%s6 + $0x20] sm:$0xff] %vm2125, %v2097
  %2131 = vst.msk [vmem:[%s6 + $0x28] sm:$0xff] %vm2125, %v2098
  %2132 = vst.msk [vmem:[%s6 + $0x30] sm:$0xff] %vm2125, %v2099
  %2133 = vst.msk [vmem:[%s6 + $0x38] sm:$0xff] %vm2125, %v2100
  %2134 = vst.msk [vmem:[%s6 + $0x40] sm:$0xff] %vm2125, %v2101
  %2135 = vst.msk [vmem:[%s6 + $0x48] sm:$0xff] %vm2125, %v2102
  %2136 = vst.msk [vmem:[%s6 + $0x50] sm:$0xff] %vm2125, %v2103
  %2137 = vst.msk [vmem:[%s6 + $0x58] sm:$0xff] %vm2125, %v2104
  %2138 = vst.msk [vmem:[%s6 + $0x60] sm:$0xff] %vm2125, %v2105
  %2139 = vst.msk [vmem:[%s6 + $0x68] sm:$0xff] %vm2125, %v2106
  %2140 = vst.msk [vmem:[%s6 + $0x70] sm:$0xff] %vm2125, %v2107
  %2141 = vst.msk [vmem:[%s6 + $0x78] sm:$0xff] %vm2125, %v2108
  %2142 = vst.msk [vmem:[%s6 + $0x80] sm:$0xff] %vm2125, %v2109
  %2143 = vst.msk [vmem:[%s6 + $0x88] sm:$0xff] %vm2125, %v2110
  %2144 = vst.msk [vmem:[%s6 + $0x90] sm:$0xff] %vm2125, %v2111
  %2145 = vst.msk [vmem:[%s6 + $0x98] sm:$0xff] %vm2125, %v2112
  %2146 = vst.msk [vmem:[%s6 + $0xa0] sm:$0xff] %vm2125, %v2113
  %2147 = vst.msk [vmem:[%s6 + $0xa8] sm:$0xff] %vm2125, %v2114
  %2148 = vst.msk [vmem:[%s6 + $0xb0] sm:$0xff] %vm2125, %v2115
  %2149 = vst.msk [vmem:[%s6 + $0xb8] sm:$0xff] %vm2125, %v2116
  %2150 = vst.msk [vmem:[%s6 + $0xc0] sm:$0xff] %vm2125, %v2117
  %2151 = vst.msk [vmem:[%s6 + $0xc8] sm:$0xff] %vm2125, %v2118
  %2152 = vst.msk [vmem:[%s6 + $0xd0] sm:$0xff] %vm2125, %v2119
  %2153 = vst.msk [vmem:[%s6 + $0xd8] sm:$0xff] %vm2125, %v2120
  %2154 = vst.msk [vmem:[%s6 + $0xe0] sm:$0xff] %vm2125, %v2121
  %2155 = vst.msk [vmem:[%s6 + $0xe8] sm:$0xff] %vm2125, %v2122
  %2156 = vst.msk [vmem:[%s6 + $0xf0] sm:$0xff] %vm2125, %v2123
  %2157 = vst.msk [vmem:[%s6 + $0xf8] sm:$0xff] %vm2125, %v2124
  // Predicated region
  $region26: #{tpu_custom_call.1} parent=0 // pred_check
    _
  $region27: #{tpu_custom_call.1} parent=0 // pred_check_branch
    %2159 = sbr.rel (0) target = $region29
  $region28: #{tpu_custom_call.1} parent=0 // pred_region
    _
  $region29: #{tpu_custom_call.1} parent=0 // pred_fallthru
    _
  // Predicated region
  $region30: #{tpu_custom_call.1} parent=0 // pred_check
    _
  $region31: #{tpu_custom_call.1} parent=0 // pred_check_branch
    %2161 = sbr.rel (0) target = $region33
  $region32: #{tpu_custom_call.1} parent=0 // pred_region
    _
  $region33: #{tpu_custom_call.1} parent=0 // pred_fallthru
    _

</llo_original>
